<compile_context>
chip_gen: v5e
topology: v5e:2x2
jax: 0.10.0
libtpu: 0.0.40
codegen_flags: <defaults>
</compile_context>

<pallas_src>
import functools

import jax
import jax.numpy as jnp
from jax.experimental import pallas as pl
from jax.experimental.pallas import tpu as pltpu

HIDDEN = 512      # hidden width of the classifier (fixed by the module)
OUT_PAD = 128     # lane-dense padded logits width (real out_features sliced outside)
K_ALIGN = 256     # K padding granularity (multiple of 256 -> any tk in {256,512,1024,...})


# ----------------------------------------------------------------------------
# Kernels
# ----------------------------------------------------------------------------
def classifier_kernel_single(x_ref, w1_ref, b1_ref, w2_ref, b2_ref, out_ref):
    # Entire head in one step (W1 resident in VMEM).
    # x_ref:   (B_pad, F_pad)    bf16
    # w1_ref:  (F_pad, HIDDEN)   bf16  BN1-folded linear_1 weight (in x out)
    # b1_ref:  (1, HIDDEN)       f32
    # w2_ref:  (HIDDEN, OUT_PAD) bf16  BN2-folded, lane-padded linear_2 weight
    # b2_ref:  (1, OUT_PAD)      f32
    # out_ref: (B_pad, OUT_PAD)  f32
    h = jnp.dot(x_ref[...], w1_ref[...], preferred_element_type=jnp.float32)
    h = jnp.maximum(h + b1_ref[...], 0.0)          # bias + ReLU (dropout = identity)
    out_ref[...] = (jnp.dot(h.astype(jnp.bfloat16), w2_ref[...],
                            preferred_element_type=jnp.float32) + b2_ref[...])


def classifier_kernel_tiled(x_ref, w1_ref, b1_ref, w2_ref, b2_ref, out_ref,
                            acc_ref, *, tk):
    # K-tiled variant for large F.  x is fully resident; only W1 is streamed.
    # x_ref:   (B_pad, F_pad)    bf16 (resident)
    # w1_ref:  (tk, HIDDEN)      bf16 (streamed chunk)
    # acc_ref: (B_pad, HIDDEN)   f32  (accumulator scratch, resident)
    k = pl.program_id(0)

    @pl.when(k == 0)
    def _():
        acc_ref[...] = jnp.zeros_like(acc_ref)

    off = pl.multiple_of(k * tk, tk)
    xk = x_ref[:, pl.ds(off, tk)]                  # aligned lane slice of resident x
    acc_ref[...] += jnp.dot(xk, w1_ref[...], preferred_element_type=jnp.float32)

    @pl.when(k == pl.num_programs(0) - 1)
    def _():
        h = jnp.maximum(acc_ref[...] + b1_ref[...], 0.0)
        out_ref[...] = (jnp.dot(h.astype(jnp.bfloat16), w2_ref[...],
                                preferred_element_type=jnp.float32) + b2_ref[...])


# ----------------------------------------------------------------------------
# Parameter construction / one-time folding
# ----------------------------------------------------------------------------
def init_params(key, in_features, hidden=HIDDEN, out_features=2):
    ks = jax.random.split(key, 8)
    p = {}
    # BatchNorm1d(in_features): weight, bias, running_mean, running_var
    p["bn1_w"] = 1.0 + 0.1 * jax.random.normal(ks[0], (in_features,), jnp.float32)
    p["bn1_b"] = 0.1 * jax.random.normal(ks[1], (in_features,), jnp.float32)
    p["bn1_rm"] = 0.05 * jax.random.normal(ks[2], (in_features,), jnp.float32)
    p["bn1_rv"] = jnp.abs(1.0 + 0.1 * jax.random.normal(ks[3], (in_features,), jnp.float32))
    # Linear(in_features, 512): PyTorch stores weight as (out, in)
    bound1 = 1.0 / jnp.sqrt(in_features)
    p["lin1_w"] = jax.random.uniform(ks[4], (hidden, in_features), jnp.float32,
                                     -bound1, bound1)
    p["lin1_b"] = jax.random.uniform(ks[5], (hidden,), jnp.float32, -bound1, bound1)
    # BatchNorm1d(512)
    p["bn2_w"] = jnp.ones((hidden,), jnp.float32)
    p["bn2_b"] = jnp.zeros((hidden,), jnp.float32)
    p["bn2_rm"] = jnp.zeros((hidden,), jnp.float32)
    p["bn2_rv"] = jnp.ones((hidden,), jnp.float32)
    # Linear(512, 2)
    bound2 = 1.0 / jnp.sqrt(hidden)
    p["lin2_w"] = jax.random.uniform(ks[6], (out_features, hidden), jnp.float32,
                                     -bound2, bound2)
    p["lin2_b"] = jax.random.uniform(ks[7], (out_features,), jnp.float32,
                                     -bound2, bound2)
    return p


def fold_params(params, eps=1e-5, k_align=K_ALIGN):
    """One-time, host-side weight prep (NOT per forward call).

    Folds eval-mode BatchNorm affines into the linear layers, pre-transposes
    weights to (in, out), zero-pads the K axis to a multiple of `k_align`,
    pads the tiny second linear to a lane-dense width, and quantizes the
    weight matrices to bf16.
    """
    s1 = params["bn1_w"] / jnp.sqrt(params["bn1_rv"] + eps)
    t1 = params["bn1_b"] - params["bn1_rm"] * s1
    s2 = params["bn2_w"] / jnp.sqrt(params["bn2_rv"] + eps)
    t2 = params["bn2_b"] - params["bn2_rm"] * s2

    w1_t = params["lin1_w"].T                       # (F, 512)
    w1_f = s1[:, None] * w1_t                       # fold BN1 scale
    b1_f = t1 @ w1_t + params["lin1_b"]             # fold BN1 shift

    w2_t = params["lin2_w"].T                       # (512, out)
    w2_f = s2[:, None] * w2_t                       # fold BN2 scale
    b2_f = t2 @ w2_t + params["lin2_b"]             # fold BN2 shift

    in_f = int(w1_f.shape[0])
    f_pad = -(-in_f // k_align) * k_align
    w1_pad = jnp.zeros((f_pad, HIDDEN), jnp.float32).at[:in_f, :].set(w1_f)

    out_f = int(w2_f.shape[1])
    w2_pad = jnp.zeros((HIDDEN, OUT_PAD), jnp.float32).at[:, :out_f].set(w2_f)
    b2_pad = jnp.zeros((OUT_PAD,), jnp.float32).at[:out_f].set(b2_f)

    return {
        "w1": w1_pad.astype(jnp.bfloat16),                  # (F_pad, 512) bf16
        "b1": b1_f.reshape(1, HIDDEN).astype(jnp.float32),  # (1, 512)     f32
        "w2": w2_pad.astype(jnp.bfloat16),                  # (512, 128)   bf16
        "b2": b2_pad.reshape(1, OUT_PAD).astype(jnp.float32),
        "out_features": out_f,
        "in_features": in_f,
    }


# ----------------------------------------------------------------------------
# Forward wrapper
# ----------------------------------------------------------------------------
@functools.partial(jax.jit,
                   static_argnames=("out_features", "tk", "single_step_max_f"))
def xception_forward(x, w1, b1, w2, b2, *, out_features=2, tk=1024,
                     single_step_max_f=4096):
    # TODO(synk): `base_net` is an externally injected nn.Module with no
    # definition in the reference file; it is treated as identity here.
    assert tk % 256 == 0
    B = x.shape[0]
    feats = x.reshape(B, -1)                         # nn.Flatten()
    F = feats.shape[1]
    F_pad = w1.shape[0]                              # K-padded at fold time
    assert F <= F_pad and w1.shape[1] == HIDDEN

    # bf16 activations (halve x HBM traffic); pad batch to the bf16 sublane
    # packing height (16) and K to the weight's padded K.
    b_pad = -(-B // 16) * 16
    feats = jnp.pad(feats.astype(jnp.bfloat16),
                    ((0, b_pad - B), (0, F_pad - F)))

    flops = 2 * b_pad * (F_pad * HIDDEN + HIDDEN * OUT_PAD)
    bytes_accessed = (feats.size * 2 + w1.size * 2 + b1.size * 4
                      + w2.size * 2 + b2.size * 4 + b_pad * OUT_PAD * 4)
    cost = pl.CostEstimate(flops=flops, transcendentals=0,
                           bytes_accessed=bytes_accessed)
    out_shape = jax.ShapeDtypeStruct((b_pad, OUT_PAD), jnp.float32)

    if F_pad <= single_step_max_f:
        # ---- Single-step path: W1 fits in VMEM with large margin ----------
        out = pl.pallas_call(
            classifier_kernel_single,
            out_shape=out_shape,
            grid_spec=pltpu.PrefetchScalarGridSpec(
                num_scalar_prefetch=0,
                grid=(1,),
                in_specs=[
                    pl.BlockSpec((b_pad, F_pad), lambda i: (0, 0)),
                    pl.BlockSpec((F_pad, HIDDEN), lambda i: (0, 0)),
                    pl.BlockSpec((1, HIDDEN), lambda i: (0, 0)),
                    pl.BlockSpec((HIDDEN, OUT_PAD), lambda i: (0, 0)),
                    pl.BlockSpec((1, OUT_PAD), lambda i: (0, 0)),
                ],
                out_specs=pl.BlockSpec((b_pad, OUT_PAD), lambda i: (0, 0)),
            ),
            compiler_params=pltpu.CompilerParams(
                dimension_semantics=("arbitrary",)),
            cost_estimate=cost,
        )(feats, w1, b1, w2, b2)
    else:
        # ---- K-tiled path: stream W1, keep x resident ----------------------
        tk_eff = min(tk, F_pad)
        while F_pad % tk_eff:      # F_pad is a multiple of 256, so this terminates
            tk_eff -= 256
        grid = (F_pad // tk_eff,)

        # Rough VMEM budget (double buffers on inputs/outputs + scratch); raise
        # v5e's 16 MiB scoped default, stay under v7x's 64 MiB per-TC physical.
        vmem_need = (2 * b_pad * F_pad * 2            # x (resident)
                     + 2 * tk_eff * HIDDEN * 2        # w1 (streamed)
                     + 2 * HIDDEN * 4                 # b1
                     + 2 * HIDDEN * OUT_PAD * 2       # w2
                     + 2 * OUT_PAD * 4                # b2
                     + 2 * b_pad * OUT_PAD * 4        # out
                     + b_pad * HIDDEN * 4)            # acc scratch
        vmem_limit = int(min(max(2 * vmem_need, 32 * 2**20), 56 * 2**20))

        out = pl.pallas_call(
            functools.partial(classifier_kernel_tiled, tk=tk_eff),
            out_shape=out_shape,
            grid_spec=pltpu.PrefetchScalarGridSpec(
                num_scalar_prefetch=0,
                grid=grid,
                in_specs=[
                    pl.BlockSpec((b_pad, F_pad), lambda k: (0, 0)),    # x resident
                    pl.BlockSpec((tk_eff, HIDDEN), lambda k: (k, 0)),  # w1 stream
                    pl.BlockSpec((1, HIDDEN), lambda k: (0, 0)),       # b1
                    pl.BlockSpec((HIDDEN, OUT_PAD), lambda k: (0, 0)),  # w2
                    pl.BlockSpec((1, OUT_PAD), lambda k: (0, 0)),      # b2
                ],
                out_specs=pl.BlockSpec((b_pad, OUT_PAD), lambda k: (0, 0)),
                scratch_shapes=[pltpu.VMEM((b_pad, HIDDEN), jnp.float32)],
            ),
            compiler_params=pltpu.CompilerParams(
                dimension_semantics=("arbitrary",),   # K is a reduction axis
                vmem_limit_bytes=vmem_limit),
            cost_estimate=cost,
        )(feats, w1, b1, w2, b2)

    return out[:B, :out_features]


# ----------------------------------------------------------------------------
# Self-test
# ----------------------------------------------------------------------------
if __name__ == "__main__":
    key = jax.random.PRNGKey(0)
    k_x, k_p = jax.random.split(key)

    # Small shapes consistent with the module: NCHW input, in_features = C*H*W
    B, C, H, W = 2, 4, 16, 16
    x = jax.random.normal(k_x, (B, C, H, W), jnp.float32)

    in_features = C * H * W  # 1024
    params = init_params(k_p, in_features)
    folded = fold_params(params)          # one-time weight prep

    # Path 1: default (single-step, W1 resident in VMEM).
    out_single = xception_forward(x, folded["w1"], folded["b1"], folded["w2"],
                                  folded["b2"],
                                  out_features=folded["out_features"])
    out_single = jax.block_until_ready(out_single)
    assert out_single.shape == (B, 2), out_single.shape

    # Path 2: force the K-tiled / accumulator variant (exercised here with
    # tk=256 -> 4 grid steps) to keep the large-F path verified.
    out_tiled = xception_forward(x, folded["w1"], folded["b1"], folded["w2"],
                                 folded["b2"],
                                 out_features=folded["out_features"],
                                 tk=256, single_step_max_f=0)
    out_tiled = jax.block_until_ready(out_tiled)
    assert out_tiled.shape == (B, 2), out_tiled.shape

    # Pure-JAX f32 reference (eval-mode BN, identity dropout).
    def ref_forward(x, p):
        eps = 1e-5
        f = x.reshape(x.shape[0], -1)
        h = (f - p["bn1_rm"]) / jnp.sqrt(p["bn1_rv"] + eps) * p["bn1_w"] + p["bn1_b"]
        h = h @ p["lin1_w"].T + p["lin1_b"]
        h = jnp.maximum(h, 0.0)
        h = (h - p["bn2_rm"]) / jnp.sqrt(p["bn2_rv"] + eps) * p["bn2_w"] + p["bn2_b"]
        return h @ p["lin2_w"].T + p["lin2_b"]

    ref = ref_forward(x, params)
    # bf16 weights/activations are an intentional quantization of this
    # memory-bound head; tolerance sized for bf16 error over a 1024-long
    # reduction.
    assert jnp.allclose(out_single, ref, atol=5e-2, rtol=5e-2), (out_single, ref)
    assert jnp.allclose(out_tiled, ref, atol=5e-2, rtol=5e-2), (out_tiled, ref)
    assert jnp.allclose(out_single, out_tiled, atol=1e-3, rtol=1e-3)

    print("KERNEL_OK")
</pallas_src>

<mosaic_0001>
module attributes {stable_mosaic.version = 11 : i64} {
  func.func @classifier_kernel_single(%arg0: i32, %arg1: memref<16x1024xbf16, #tpu.memory_space<vmem>>, %arg2: memref<1024x512xbf16, #tpu.memory_space<vmem>>, %arg3: memref<1x512xf32, #tpu.memory_space<vmem>>, %arg4: memref<512x128xbf16, #tpu.memory_space<vmem>>, %arg5: memref<1x128xf32, #tpu.memory_space<vmem>>, %arg6: memref<16x128xf32, #tpu.memory_space<vmem>>) attributes {dimension_semantics = [#tpu.dimension_semantics<arbitrary>], iteration_bounds = array<i64: 1>, scalar_prefetch = 0 : i64, scratch_operands = 0 : i64, tpu.core_type = #tpu.core_type<tc>, window_params = [{pipeline_mode = #tpu.pipeline_mode<synchronous>, transform_indices = @transform_0, window_bounds = array<i64: 16, 1024>}, {pipeline_mode = #tpu.pipeline_mode<synchronous>, transform_indices = @transform_1, window_bounds = array<i64: 1024, 512>}, {pipeline_mode = #tpu.pipeline_mode<synchronous>, transform_indices = @transform_2, window_bounds = array<i64: 1, 512>}, {pipeline_mode = #tpu.pipeline_mode<synchronous>, transform_indices = @transform_3, window_bounds = array<i64: 512, 128>}, {pipeline_mode = #tpu.pipeline_mode<synchronous>, transform_indices = @transform_4, window_bounds = array<i64: 1, 128>}, {pipeline_mode = #tpu.pipeline_mode<synchronous>, transform_indices = @transform_5, window_bounds = array<i64: 16, 128>}]} {
    %c0 = arith.constant 0 : index
    %c0_0 = arith.constant 0 : index
    %0 = vector.load %arg1[%c0, %c0_0] : memref<16x1024xbf16, #tpu.memory_space<vmem>>, vector<16x1024xbf16>
    %c0_1 = arith.constant 0 : index
    %c0_2 = arith.constant 0 : index
    %1 = vector.load %arg2[%c0_1, %c0_2] : memref<1024x512xbf16, #tpu.memory_space<vmem>>, vector<1024x512xbf16>
    %cst = arith.constant dense<0.000000e+00> : vector<16x512xf32>
    %2 = tpu.matmul %0, %1, %cst {dimension_numbers = #tpu.dot_dimension_numbers<[1], [0], [0], [1], [0, 0, 1, 1], [], []>} : vector<16x1024xbf16>, vector<1024x512xbf16>, vector<16x512xf32> -> vector<16x512xf32>
    %c0_3 = arith.constant 0 : index
    %c0_4 = arith.constant 0 : index
    %3 = vector.load %arg3[%c0_3, %c0_4] : memref<1x512xf32, #tpu.memory_space<vmem>>, vector<1x512xf32>
    %4 = vector.broadcast %3 : vector<1x512xf32> to vector<16x512xf32>
    %5 = arith.addf %2, %4 : vector<16x512xf32>
    %cst_5 = arith.constant 0.000000e+00 : f32
    %6 = vector.broadcast %cst_5 : f32 to vector<16x512xf32>
    %7 = arith.maximumf %5, %6 : vector<16x512xf32>
    %8 = arith.truncf %7 : vector<16x512xf32> to vector<16x512xbf16>
    %c0_6 = arith.constant 0 : index
    %c0_7 = arith.constant 0 : index
    %9 = vector.load %arg4[%c0_6, %c0_7] : memref<512x128xbf16, #tpu.memory_space<vmem>>, vector<512x128xbf16>
    %cst_8 = arith.constant dense<0.000000e+00> : vector<16x128xf32>
    %10 = tpu.matmul %8, %9, %cst_8 {dimension_numbers = #tpu.dot_dimension_numbers<[1], [0], [0], [1], [0, 0, 1, 1], [], []>} : vector<16x512xbf16>, vector<512x128xbf16>, vector<16x128xf32> -> vector<16x128xf32>
    %c0_9 = arith.constant 0 : index
    %c0_10 = arith.constant 0 : index
    %11 = vector.load %arg5[%c0_9, %c0_10] : memref<1x128xf32, #tpu.memory_space<vmem>>, vector<1x128xf32>
    %12 = vector.broadcast %11 : vector<1x128xf32> to vector<16x128xf32>
    %13 = arith.addf %10, %12 : vector<16x128xf32>
    %c0_11 = arith.constant 0 : index
    %c0_12 = arith.constant 0 : index
    %14 = vector.load %arg6[%c0_11, %c0_12] : memref<16x128xf32, #tpu.memory_space<vmem>>, vector<16x128xf32>
    tpu.vector_store %arg6[%c0_11, %c0_12], %13 {strides = array<i32>} : memref<16x128xf32, #tpu.memory_space<vmem>>, vector<16x128xf32>,
    return
  }
  func.func @transform_0(%arg0: i32) -> (i32, i32) {
    %c0_i32 = arith.constant 0 : i32
    %c0_i32_0 = arith.constant 0 : i32
    %c0_i32_1 = arith.constant 0 : i32
    return %c0_i32, %c0_i32_0 : i32, i32
  }
  func.func @transform_1(%arg0: i32) -> (i32, i32) {
    %c0_i32 = arith.constant 0 : i32
    %c0_i32_0 = arith.constant 0 : i32
    %c0_i32_1 = arith.constant 0 : i32
    return %c0_i32, %c0_i32_0 : i32, i32
  }
  func.func @transform_2(%arg0: i32) -> (i32, i32) {
    %c0_i32 = arith.constant 0 : i32
    %c0_i32_0 = arith.constant 0 : i32
    %c0_i32_1 = arith.constant 0 : i32
    return %c0_i32, %c0_i32_0 : i32, i32
  }
  func.func @transform_3(%arg0: i32) -> (i32, i32) {
    %c0_i32 = arith.constant 0 : i32
    %c0_i32_0 = arith.constant 0 : i32
    %c0_i32_1 = arith.constant 0 : i32
    return %c0_i32, %c0_i32_0 : i32, i32
  }
  func.func @transform_4(%arg0: i32) -> (i32, i32) {
    %c0_i32 = arith.constant 0 : i32
    %c0_i32_0 = arith.constant 0 : i32
    %c0_i32_1 = arith.constant 0 : i32
    return %c0_i32, %c0_i32_0 : i32, i32
  }
  func.func @transform_5(%arg0: i32) -> (i32, i32) {
    %c0_i32 = arith.constant 0 : i32
    %c0_i32_0 = arith.constant 0 : i32
    %c0_i32_1 = arith.constant 0 : i32
    return %c0_i32, %c0_i32_0 : i32, i32
  }
}

</mosaic_0001>

<llo_original>
// kernel: xception_forward.1
$region0: #{xception_forward.1}
  #allocation0 [shape = 'u32[]', space=smem, size = 0x4, offset = 0x4, fixed_abs, tag = 'smem constant byte address 0x4 - core index']
  #allocation1 [shape = 'u32[72,128]{1,0:T(1,128)}', space=vmem, size = 0x9000, scoped, tag = 'internal scratch']
  %s0 = inlined_call_operand.vmem [shape: bf16[16,1024], index: 0, kind: input, shape index: {}]
  %s1 = inlined_call_operand.hbm [shape: bf16[1024,512], index: 1, kind: input, shape index: {}]
  %s2 = inlined_call_operand.vmem [shape: f32[1,512], index: 2, kind: input, shape index: {}]
  %s3 = inlined_call_operand.vmem [shape: bf16[512,128], index: 3, kind: input, shape index: {}]
  %s4 = inlined_call_operand.vmem [shape: f32[1,128], index: 4, kind: input, shape index: {}]
  %s5 = inlined_call_operand.vmem [shape: f32[16,128], index: 5, kind: output, shape index: {}]
  %s6 = sld [smem:[#allocation0]]
  $region34: #{xception_forward.1} parent=0
    _
  %s8 = ssub.s32 1, %s6
  %s9 = scalar_select 0, %s8, %s6
  $region1: #{xception_forward.1} parent=0
    #allocation2 [shape = 'u8[1048576]{0}', space=vmem, size = 0x100000, scoped, tag = 'input window, operand 1, single buffered']
    #allocation3 [shape = 's32[1]{0}', space=sflag, size = 0x4, scoped, tag = 'scoped memory for xception_forward.1']
    %10 = vsyncpa [#allocation3], 0
    // Predicated region
    $region2: #{xception_forward.1} parent=1 // pred_check
      _
    $region3: #{xception_forward.1} parent=1 // pred_check_branch
      %12 = sbr.rel (0) target = $region5
    $region4: #{xception_forward.1} parent=1 // pred_region
      _
    $region5: #{xception_forward.1} parent=1 // pred_fallthru
      _
    // Predicated region
    $region6: #{xception_forward.1} parent=1 // pred_check
      _
    $region7: #{xception_forward.1} parent=1 // pred_check_branch
      %14 = sbr.rel (0) target = $region9
    $region8: #{xception_forward.1} parent=1 // pred_region
      %16 = vsyncadd [#allocation3], 0
      %s17 = sshll.u32 %s1, 4
      %s18 = int_to_ptr.hbm [resolvable:$true] %s17
      %s19 = sshll.u32 [#allocation2], 4
      %s20 = int_to_ptr.vmem [resolvable:$true] %s19
      %25 = dma.hbm_to_vmem [thread:$0]  %s18, 32768, %s20, [#allocation3], 256, 256, 16
    $region9: #{xception_forward.1} parent=1 // pred_fallthru
      _
    // Predicated region
    $region10: #{xception_forward.1} parent=1 // pred_check
      _
    $region11: #{xception_forward.1} parent=1 // pred_check_branch
      %27 = sbr.rel (0) target = $region13
    $region12: #{xception_forward.1} parent=1 // pred_region
      _
    $region13: #{xception_forward.1} parent=1 // pred_fallthru
      _
    // Predicated region
    $region14: #{xception_forward.1} parent=1 // pred_check
      _
    $region15: #{xception_forward.1} parent=1 // pred_check_branch
      %29 = sbr.rel (0) target = $region17
    $region16: #{xception_forward.1} parent=1 // pred_region
      _
    $region17: #{xception_forward.1} parent=1 // pred_fallthru
      _
    // Predicated region
    $region18: #{xception_forward.1} parent=1 // pred_check
      _
    $region19: #{xception_forward.1} parent=1 // pred_check_branch
      %31 = sbr.rel (0) target = $region21
    $region20: #{xception_forward.1} parent=1 // pred_region
      _
    $region21: #{xception_forward.1} parent=1 // pred_fallthru
      _
    // Predicated region
    $region22: #{xception_forward.1} parent=1 // pred_check
      _
    $region23: #{xception_forward.1} parent=1 // pred_check_branch
      %33 = sbr.rel (0) target = $region25
    $region24: #{xception_forward.1} parent=1 // pred_region
      %35 = dma.done [#allocation3], 32768
    $region25: #{xception_forward.1} parent=1 // pred_fallthru
      _
    %v36 = vld [vmem:[%s0] sm:$0xff]
    %v37 = vld [vmem:[%s0 + $0x8] sm:$0xff]
    %v38 = vld [vmem:[%s0 + $0x10] sm:$0xff]
    %v39 = vld [vmem:[%s0 + $0x18] sm:$0xff]
    %v40 = vld [vmem:[%s0 + $0x20] sm:$0xff]
    %v41 = vld [vmem:[%s0 + $0x28] sm:$0xff]
    %v42 = vld [vmem:[%s0 + $0x30] sm:$0xff]
    %v43 = vld [vmem:[%s0 + $0x38] sm:$0xff]
    %v44 = vld [vmem:[#allocation2] sm:$0xff]
    %v45 = vld [vmem:[#allocation2 + $0x8] sm:$0xff]
    %v46 = vld [vmem:[#allocation2 + $0x10] sm:$0xff]
    %v47 = vld [vmem:[#allocation2 + $0x18] sm:$0xff]
    %v48 = vld [vmem:[#allocation2 + $0x20] sm:$0xff]
    %v49 = vld [vmem:[#allocation2 + $0x28] sm:$0xff]
    %v50 = vld [vmem:[#allocation2 + $0x30] sm:$0xff]
    %v51 = vld [vmem:[#allocation2 + $0x38] sm:$0xff]
    %v52 = vld [vmem:[#allocation2 + $0x40] sm:$0xff]
    %v53 = vld [vmem:[#allocation2 + $0x48] sm:$0xff]
    %v54 = vld [vmem:[#allocation2 + $0x50] sm:$0xff]
    %v55 = vld [vmem:[#allocation2 + $0x58] sm:$0xff]
    %v56 = vld [vmem:[#allocation2 + $0x60] sm:$0xff]
    %v57 = vld [vmem:[#allocation2 + $0x68] sm:$0xff]
    %v58 = vld [vmem:[#allocation2 + $0x70] sm:$0xff]
    %v59 = vld [vmem:[#allocation2 + $0x78] sm:$0xff]
    %v60 = vld [vmem:[#allocation2 + $0x80] sm:$0xff]
    %v61 = vld [vmem:[#allocation2 + $0x88] sm:$0xff]
    %v62 = vld [vmem:[#allocation2 + $0x90] sm:$0xff]
    %v63 = vld [vmem:[#allocation2 + $0x98] sm:$0xff]
    %v64 = vld [vmem:[#allocation2 + $0xa0] sm:$0xff]
    %v65 = vld [vmem:[#allocation2 + $0xa8] sm:$0xff]
    %v66 = vld [vmem:[#allocation2 + $0xb0] sm:$0xff]
    %v67 = vld [vmem:[#allocation2 + $0xb8] sm:$0xff]
    %v68 = vld [vmem:[#allocation2 + $0xc0] sm:$0xff]
    %v69 = vld [vmem:[#allocation2 + $0xc8] sm:$0xff]
    %v70 = vld [vmem:[#allocation2 + $0xd0] sm:$0xff]
    %v71 = vld [vmem:[#allocation2 + $0xd8] sm:$0xff]
    %v72 = vld [vmem:[#allocation2 + $0xe0] sm:$0xff]
    %v73 = vld [vmem:[#allocation2 + $0xe8] sm:$0xff]
    %v74 = vld [vmem:[#allocation2 + $0xf0] sm:$0xff]
    %v75 = vld [vmem:[#allocation2 + $0xf8] sm:$0xff]
    %v76 = vld [vmem:[#allocation2 + $0x100] sm:$0xff]
    %v77 = vld [vmem:[#allocation2 + $0x108] sm:$0xff]
    %v78 = vld [vmem:[#allocation2 + $0x110] sm:$0xff]
    %v79 = vld [vmem:[#allocation2 + $0x118] sm:$0xff]
    %v80 = vld [vmem:[#allocation2 + $0x120] sm:$0xff]
    %v81 = vld [vmem:[#allocation2 + $0x128] sm:$0xff]
    %v82 = vld [vmem:[#allocation2 + $0x130] sm:$0xff]
    %v83 = vld [vmem:[#allocation2 + $0x138] sm:$0xff]
    %v84 = vld [vmem:[#allocation2 + $0x140] sm:$0xff]
    %v85 = vld [vmem:[#allocation2 + $0x148] sm:$0xff]
    %v86 = vld [vmem:[#allocation2 + $0x150] sm:$0xff]
    %v87 = vld [vmem:[#allocation2 + $0x158] sm:$0xff]
    %v88 = vld [vmem:[#allocation2 + $0x160] sm:$0xff]
    %v89 = vld [vmem:[#allocation2 + $0x168] sm:$0xff]
    %v90 = vld [vmem:[#allocation2 + $0x170] sm:$0xff]
    %v91 = vld [vmem:[#allocation2 + $0x178] sm:$0xff]
    %v92 = vld [vmem:[#allocation2 + $0x180] sm:$0xff]
    %v93 = vld [vmem:[#allocation2 + $0x188] sm:$0xff]
    %v94 = vld [vmem:[#allocation2 + $0x190] sm:$0xff]
    %v95 = vld [vmem:[#allocation2 + $0x198] sm:$0xff]
    %v96 = vld [vmem:[#allocation2 + $0x1a0] sm:$0xff]
    %v97 = vld [vmem:[#allocation2 + $0x1a8] sm:$0xff]
    %v98 = vld [vmem:[#allocation2 + $0x1b0] sm:$0xff]
    %v99 = vld [vmem:[#allocation2 + $0x1b8] sm:$0xff]
    %v100 = vld [vmem:[#allocation2 + $0x1c0] sm:$0xff]
    %v101 = vld [vmem:[#allocation2 + $0x1c8] sm:$0xff]
    %v102 = vld [vmem:[#allocation2 + $0x1d0] sm:$0xff]
    %v103 = vld [vmem:[#allocation2 + $0x1d8] sm:$0xff]
    %v104 = vld [vmem:[#allocation2 + $0x1e0] sm:$0xff]
    %v105 = vld [vmem:[#allocation2 + $0x1e8] sm:$0xff]
    %v106 = vld [vmem:[#allocation2 + $0x1f0] sm:$0xff]
    %v107 = vld [vmem:[#allocation2 + $0x1f8] sm:$0xff]
    %v108 = vld [vmem:[#allocation2 + $0x200] sm:$0xff]
    %v109 = vld [vmem:[#allocation2 + $0x208] sm:$0xff]
    %v110 = vld [vmem:[#allocation2 + $0x210] sm:$0xff]
    %v111 = vld [vmem:[#allocation2 + $0x218] sm:$0xff]
    %v112 = vld [vmem:[#allocation2 + $0x220] sm:$0xff]
    %v113 = vld [vmem:[#allocation2 + $0x228] sm:$0xff]
    %v114 = vld [vmem:[#allocation2 + $0x230] sm:$0xff]
    %v115 = vld [vmem:[#allocation2 + $0x238] sm:$0xff]
    %v116 = vld [vmem:[#allocation2 + $0x240] sm:$0xff]
    %v117 = vld [vmem:[#allocation2 + $0x248] sm:$0xff]
    %v118 = vld [vmem:[#allocation2 + $0x250] sm:$0xff]
    %v119 = vld [vmem:[#allocation2 + $0x258] sm:$0xff]
    %v120 = vld [vmem:[#allocation2 + $0x260] sm:$0xff]
    %v121 = vld [vmem:[#allocation2 + $0x268] sm:$0xff]
    %v122 = vld [vmem:[#allocation2 + $0x270] sm:$0xff]
    %v123 = vld [vmem:[#allocation2 + $0x278] sm:$0xff]
    %v124 = vld [vmem:[#allocation2 + $0x280] sm:$0xff]
    %v125 = vld [vmem:[#allocation2 + $0x288] sm:$0xff]
    %v126 = vld [vmem:[#allocation2 + $0x290] sm:$0xff]
    %v127 = vld [vmem:[#allocation2 + $0x298] sm:$0xff]
    %v128 = vld [vmem:[#allocation2 + $0x2a0] sm:$0xff]
    %v129 = vld [vmem:[#allocation2 + $0x2a8] sm:$0xff]
    %v130 = vld [vmem:[#allocation2 + $0x2b0] sm:$0xff]
    %v131 = vld [vmem:[#allocation2 + $0x2b8] sm:$0xff]
    %v132 = vld [vmem:[#allocation2 + $0x2c0] sm:$0xff]
    %v133 = vld [vmem:[#allocation2 + $0x2c8] sm:$0xff]
    %v134 = vld [vmem:[#allocation2 + $0x2d0] sm:$0xff]
    %v135 = vld [vmem:[#allocation2 + $0x2d8] sm:$0xff]
    %v136 = vld [vmem:[#allocation2 + $0x2e0] sm:$0xff]
    %v137 = vld [vmem:[#allocation2 + $0x2e8] sm:$0xff]
    %v138 = vld [vmem:[#allocation2 + $0x2f0] sm:$0xff]
    %v139 = vld [vmem:[#allocation2 + $0x2f8] sm:$0xff]
    %v140 = vld [vmem:[#allocation2 + $0x300] sm:$0xff]
    %v141 = vld [vmem:[#allocation2 + $0x308] sm:$0xff]
    %v142 = vld [vmem:[#allocation2 + $0x310] sm:$0xff]
    %v143 = vld [vmem:[#allocation2 + $0x318] sm:$0xff]
    %v144 = vld [vmem:[#allocation2 + $0x320] sm:$0xff]
    %v145 = vld [vmem:[#allocation2 + $0x328] sm:$0xff]
    %v146 = vld [vmem:[#allocation2 + $0x330] sm:$0xff]
    %v147 = vld [vmem:[#allocation2 + $0x338] sm:$0xff]
    %v148 = vld [vmem:[#allocation2 + $0x340] sm:$0xff]
    %v149 = vld [vmem:[#allocation2 + $0x348] sm:$0xff]
    %v150 = vld [vmem:[#allocation2 + $0x350] sm:$0xff]
    %v151 = vld [vmem:[#allocation2 + $0x358] sm:$0xff]
    %v152 = vld [vmem:[#allocation2 + $0x360] sm:$0xff]
    %v153 = vld [vmem:[#allocation2 + $0x368] sm:$0xff]
    %v154 = vld [vmem:[#allocation2 + $0x370] sm:$0xff]
    %v155 = vld [vmem:[#allocation2 + $0x378] sm:$0xff]
    %v156 = vld [vmem:[#allocation2 + $0x380] sm:$0xff]
    %v157 = vld [vmem:[#allocation2 + $0x388] sm:$0xff]
    %v158 = vld [vmem:[#allocation2 + $0x390] sm:$0xff]
    %v159 = vld [vmem:[#allocation2 + $0x398] sm:$0xff]
    %v160 = vld [vmem:[#allocation2 + $0x3a0] sm:$0xff]
    %v161 = vld [vmem:[#allocation2 + $0x3a8] sm:$0xff]
    %v162 = vld [vmem:[#allocation2 + $0x3b0] sm:$0xff]
    %v163 = vld [vmem:[#allocation2 + $0x3b8] sm:$0xff]
    %v164 = vld [vmem:[#allocation2 + $0x3c0] sm:$0xff]
    %v165 = vld [vmem:[#allocation2 + $0x3c8] sm:$0xff]
    %v166 = vld [vmem:[#allocation2 + $0x3d0] sm:$0xff]
    %v167 = vld [vmem:[#allocation2 + $0x3d8] sm:$0xff]
    %v168 = vld [vmem:[#allocation2 + $0x3e0] sm:$0xff]
    %v169 = vld [vmem:[#allocation2 + $0x3e8] sm:$0xff]
    %v170 = vld [vmem:[#allocation2 + $0x3f0] sm:$0xff]
    %v171 = vld [vmem:[#allocation2 + $0x3f8] sm:$0xff]
    %v172 = vld [vmem:[#allocation2 + $0x400] sm:$0xff]
    %v173 = vld [vmem:[#allocation2 + $0x408] sm:$0xff]
    %v174 = vld [vmem:[#allocation2 + $0x410] sm:$0xff]
    %v175 = vld [vmem:[#allocation2 + $0x418] sm:$0xff]
    %v176 = vld [vmem:[#allocation2 + $0x420] sm:$0xff]
    %v177 = vld [vmem:[#allocation2 + $0x428] sm:$0xff]
    %v178 = vld [vmem:[#allocation2 + $0x430] sm:$0xff]
    %v179 = vld [vmem:[#allocation2 + $0x438] sm:$0xff]
    %v180 = vld [vmem:[#allocation2 + $0x440] sm:$0xff]
    %v181 = vld [vmem:[#allocation2 + $0x448] sm:$0xff]
    %v182 = vld [vmem:[#allocation2 + $0x450] sm:$0xff]
    %v183 = vld [vmem:[#allocation2 + $0x458] sm:$0xff]
    %v184 = vld [vmem:[#allocation2 + $0x460] sm:$0xff]
    %v185 = vld [vmem:[#allocation2 + $0x468] sm:$0xff]
    %v186 = vld [vmem:[#allocation2 + $0x470] sm:$0xff]
    %v187 = vld [vmem:[#allocation2 + $0x478] sm:$0xff]
    %v188 = vld [vmem:[#allocation2 + $0x480] sm:$0xff]
    %v189 = vld [vmem:[#allocation2 + $0x488] sm:$0xff]
    %v190 = vld [vmem:[#allocation2 + $0x490] sm:$0xff]
    %v191 = vld [vmem:[#allocation2 + $0x498] sm:$0xff]
    %v192 = vld [vmem:[#allocation2 + $0x4a0] sm:$0xff]
    %v193 = vld [vmem:[#allocation2 + $0x4a8] sm:$0xff]
    %v194 = vld [vmem:[#allocation2 + $0x4b0] sm:$0xff]
    %v195 = vld [vmem:[#allocation2 + $0x4b8] sm:$0xff]
    %v196 = vld [vmem:[#allocation2 + $0x4c0] sm:$0xff]
    %v197 = vld [vmem:[#allocation2 + $0x4c8] sm:$0xff]
    %v198 = vld [vmem:[#allocation2 + $0x4d0] sm:$0xff]
    %v199 = vld [vmem:[#allocation2 + $0x4d8] sm:$0xff]
    %v200 = vld [vmem:[#allocation2 + $0x4e0] sm:$0xff]
    %v201 = vld [vmem:[#allocation2 + $0x4e8] sm:$0xff]
    %v202 = vld [vmem:[#allocation2 + $0x4f0] sm:$0xff]
    %v203 = vld [vmem:[#allocation2 + $0x4f8] sm:$0xff]
    %v204 = vld [vmem:[#allocation2 + $0x500] sm:$0xff]
    %v205 = vld [vmem:[#allocation2 + $0x508] sm:$0xff]
    %v206 = vld [vmem:[#allocation2 + $0x510] sm:$0xff]
    %v207 = vld [vmem:[#allocation2 + $0x518] sm:$0xff]
    %v208 = vld [vmem:[#allocation2 + $0x520] sm:$0xff]
    %v209 = vld [vmem:[#allocation2 + $0x528] sm:$0xff]
    %v210 = vld [vmem:[#allocation2 + $0x530] sm:$0xff]
    %v211 = vld [vmem:[#allocation2 + $0x538] sm:$0xff]
    %v212 = vld [vmem:[#allocation2 + $0x540] sm:$0xff]
    %v213 = vld [vmem:[#allocation2 + $0x548] sm:$0xff]
    %v214 = vld [vmem:[#allocation2 + $0x550] sm:$0xff]
    %v215 = vld [vmem:[#allocation2 + $0x558] sm:$0xff]
    %v216 = vld [vmem:[#allocation2 + $0x560] sm:$0xff]
    %v217 = vld [vmem:[#allocation2 + $0x568] sm:$0xff]
    %v218 = vld [vmem:[#allocation2 + $0x570] sm:$0xff]
    %v219 = vld [vmem:[#allocation2 + $0x578] sm:$0xff]
    %v220 = vld [vmem:[#allocation2 + $0x580] sm:$0xff]
    %v221 = vld [vmem:[#allocation2 + $0x588] sm:$0xff]
    %v222 = vld [vmem:[#allocation2 + $0x590] sm:$0xff]
    %v223 = vld [vmem:[#allocation2 + $0x598] sm:$0xff]
    %v224 = vld [vmem:[#allocation2 + $0x5a0] sm:$0xff]
    %v225 = vld [vmem:[#allocation2 + $0x5a8] sm:$0xff]
    %v226 = vld [vmem:[#allocation2 + $0x5b0] sm:$0xff]
    %v227 = vld [vmem:[#allocation2 + $0x5b8] sm:$0xff]
    %v228 = vld [vmem:[#allocation2 + $0x5c0] sm:$0xff]
    %v229 = vld [vmem:[#allocation2 + $0x5c8] sm:$0xff]
    %v230 = vld [vmem:[#allocation2 + $0x5d0] sm:$0xff]
    %v231 = vld [vmem:[#allocation2 + $0x5d8] sm:$0xff]
    %v232 = vld [vmem:[#allocation2 + $0x5e0] sm:$0xff]
    %v233 = vld [vmem:[#allocation2 + $0x5e8] sm:$0xff]
    %v234 = vld [vmem:[#allocation2 + $0x5f0] sm:$0xff]
    %v235 = vld [vmem:[#allocation2 + $0x5f8] sm:$0xff]
    %v236 = vld [vmem:[#allocation2 + $0x600] sm:$0xff]
    %v237 = vld [vmem:[#allocation2 + $0x608] sm:$0xff]
    %v238 = vld [vmem:[#allocation2 + $0x610] sm:$0xff]
    %v239 = vld [vmem:[#allocation2 + $0x618] sm:$0xff]
    %v240 = vld [vmem:[#allocation2 + $0x620] sm:$0xff]
    %v241 = vld [vmem:[#allocation2 + $0x628] sm:$0xff]
    %v242 = vld [vmem:[#allocation2 + $0x630] sm:$0xff]
    %v243 = vld [vmem:[#allocation2 + $0x638] sm:$0xff]
    %v244 = vld [vmem:[#allocation2 + $0x640] sm:$0xff]
    %v245 = vld [vmem:[#allocation2 + $0x648] sm:$0xff]
    %v246 = vld [vmem:[#allocation2 + $0x650] sm:$0xff]
    %v247 = vld [vmem:[#allocation2 + $0x658] sm:$0xff]
    %v248 = vld [vmem:[#allocation2 + $0x660] sm:$0xff]
    %v249 = vld [vmem:[#allocation2 + $0x668] sm:$0xff]
    %v250 = vld [vmem:[#allocation2 + $0x670] sm:$0xff]
    %v251 = vld [vmem:[#allocation2 + $0x678] sm:$0xff]
    %v252 = vld [vmem:[#allocation2 + $0x680] sm:$0xff]
    %v253 = vld [vmem:[#allocation2 + $0x688] sm:$0xff]
    %v254 = vld [vmem:[#allocation2 + $0x690] sm:$0xff]
    %v255 = vld [vmem:[#allocation2 + $0x698] sm:$0xff]
    %v256 = vld [vmem:[#allocation2 + $0x6a0] sm:$0xff]
    %v257 = vld [vmem:[#allocation2 + $0x6a8] sm:$0xff]
    %v258 = vld [vmem:[#allocation2 + $0x6b0] sm:$0xff]
    %v259 = vld [vmem:[#allocation2 + $0x6b8] sm:$0xff]
    %v260 = vld [vmem:[#allocation2 + $0x6c0] sm:$0xff]
    %v261 = vld [vmem:[#allocation2 + $0x6c8] sm:$0xff]
    %v262 = vld [vmem:[#allocation2 + $0x6d0] sm:$0xff]
    %v263 = vld [vmem:[#allocation2 + $0x6d8] sm:$0xff]
    %v264 = vld [vmem:[#allocation2 + $0x6e0] sm:$0xff]
    %v265 = vld [vmem:[#allocation2 + $0x6e8] sm:$0xff]
    %v266 = vld [vmem:[#allocation2 + $0x6f0] sm:$0xff]
    %v267 = vld [vmem:[#allocation2 + $0x6f8] sm:$0xff]
    %v268 = vld [vmem:[#allocation2 + $0x700] sm:$0xff]
    %v269 = vld [vmem:[#allocation2 + $0x708] sm:$0xff]
    %v270 = vld [vmem:[#allocation2 + $0x710] sm:$0xff]
    %v271 = vld [vmem:[#allocation2 + $0x718] sm:$0xff]
    %v272 = vld [vmem:[#allocation2 + $0x720] sm:$0xff]
    %v273 = vld [vmem:[#allocation2 + $0x728] sm:$0xff]
    %v274 = vld [vmem:[#allocation2 + $0x730] sm:$0xff]
    %v275 = vld [vmem:[#allocation2 + $0x738] sm:$0xff]
    %v276 = vld [vmem:[#allocation2 + $0x740] sm:$0xff]
    %v277 = vld [vmem:[#allocation2 + $0x748] sm:$0xff]
    %v278 = vld [vmem:[#allocation2 + $0x750] sm:$0xff]
    %v279 = vld [vmem:[#allocation2 + $0x758] sm:$0xff]
    %v280 = vld [vmem:[#allocation2 + $0x760] sm:$0xff]
    %v281 = vld [vmem:[#allocation2 + $0x768] sm:$0xff]
    %v282 = vld [vmem:[#allocation2 + $0x770] sm:$0xff]
    %v283 = vld [vmem:[#allocation2 + $0x778] sm:$0xff]
    %v284 = vld [vmem:[#allocation2 + $0x780] sm:$0xff]
    %v285 = vld [vmem:[#allocation2 + $0x788] sm:$0xff]
    %v286 = vld [vmem:[#allocation2 + $0x790] sm:$0xff]
    %v287 = vld [vmem:[#allocation2 + $0x798] sm:$0xff]
    %v288 = vld [vmem:[#allocation2 + $0x7a0] sm:$0xff]
    %v289 = vld [vmem:[#allocation2 + $0x7a8] sm:$0xff]
    %v290 = vld [vmem:[#allocation2 + $0x7b0] sm:$0xff]
    %v291 = vld [vmem:[#allocation2 + $0x7b8] sm:$0xff]
    %v292 = vld [vmem:[#allocation2 + $0x7c0] sm:$0xff]
    %v293 = vld [vmem:[#allocation2 + $0x7c8] sm:$0xff]
    %v294 = vld [vmem:[#allocation2 + $0x7d0] sm:$0xff]
    %v295 = vld [vmem:[#allocation2 + $0x7d8] sm:$0xff]
    %v296 = vld [vmem:[#allocation2 + $0x7e0] sm:$0xff]
    %v297 = vld [vmem:[#allocation2 + $0x7e8] sm:$0xff]
    %v298 = vld [vmem:[#allocation2 + $0x7f0] sm:$0xff]
    %v299 = vld [vmem:[#allocation2 + $0x7f8] sm:$0xff]
    %v300 = vld [vmem:[%s2] sm:$0xf]
    %v302 = vperm.slane %v300, 0
    %v303 = vperm.slane %v300, 1
    %v304 = vperm.slane %v300, 2
    %v305 = vperm.slane %v300, 3
    %v318 = vunpack.c.l.b16 %v36
    %v319 = vunpack.c.h.b16 %v36
    %v320 = vunpack.c.l.b16 %v37
    %v321 = vunpack.c.h.b16 %v37
    %v322 = vunpack.c.l.b16 %v38
    %v323 = vunpack.c.h.b16 %v38
    %v324 = vunpack.c.l.b16 %v39
    %v325 = vunpack.c.h.b16 %v39
    %v326 = vunpack.c.l.b16 %v40
    %v327 = vunpack.c.h.b16 %v40
    %v328 = vunpack.c.l.b16 %v41
    %v329 = vunpack.c.h.b16 %v41
    %v330 = vunpack.c.l.b16 %v42
    %v331 = vunpack.c.h.b16 %v42
    %v332 = vunpack.c.l.b16 %v43
    %v333 = vunpack.c.h.b16 %v43
    %v334 = vpack.c.b16 %v326, %v318
    %v335 = vpack.c.b16 %v327, %v319
    %v336 = vpack.c.b16 %v328, %v320
    %v337 = vpack.c.b16 %v329, %v321
    %v338 = vpack.c.b16 %v330, %v322
    %v339 = vpack.c.b16 %v331, %v323
    %v340 = vpack.c.b16 %v332, %v324
    %v341 = vpack.c.b16 %v333, %v325
    %v606 = vunpack.c.l.b16 %v44
    %v607 = vunpack.c.h.b16 %v44
    %v608 = vunpack.c.l.b16 %v45
    %v609 = vunpack.c.h.b16 %v45
    %v610 = vunpack.c.l.b16 %v46
    %v611 = vunpack.c.h.b16 %v46
    %v612 = vunpack.c.l.b16 %v47
    %v613 = vunpack.c.h.b16 %v47
    %v614 = vunpack.c.l.b16 %v48
    %v615 = vunpack.c.h.b16 %v48
    %v616 = vunpack.c.l.b16 %v49
    %v617 = vunpack.c.h.b16 %v49
    %v618 = vunpack.c.l.b16 %v50
    %v619 = vunpack.c.h.b16 %v50
    %v620 = vunpack.c.l.b16 %v51
    %v621 = vunpack.c.h.b16 %v51
    %v622 = vunpack.c.l.b16 %v52
    %v623 = vunpack.c.h.b16 %v52
    %v624 = vunpack.c.l.b16 %v53
    %v625 = vunpack.c.h.b16 %v53
    %v626 = vunpack.c.l.b16 %v54
    %v627 = vunpack.c.h.b16 %v54
    %v628 = vunpack.c.l.b16 %v55
    %v629 = vunpack.c.h.b16 %v55
    %v630 = vunpack.c.l.b16 %v56
    %v631 = vunpack.c.h.b16 %v56
    %v632 = vunpack.c.l.b16 %v57
    %v633 = vunpack.c.h.b16 %v57
    %v634 = vunpack.c.l.b16 %v58
    %v635 = vunpack.c.h.b16 %v58
    %v636 = vunpack.c.l.b16 %v59
    %v637 = vunpack.c.h.b16 %v59
    %v638 = vunpack.c.l.b16 %v60
    %v639 = vunpack.c.h.b16 %v60
    %v640 = vunpack.c.l.b16 %v61
    %v641 = vunpack.c.h.b16 %v61
    %v642 = vunpack.c.l.b16 %v62
    %v643 = vunpack.c.h.b16 %v62
    %v644 = vunpack.c.l.b16 %v63
    %v645 = vunpack.c.h.b16 %v63
    %v646 = vunpack.c.l.b16 %v64
    %v647 = vunpack.c.h.b16 %v64
    %v648 = vunpack.c.l.b16 %v65
    %v649 = vunpack.c.h.b16 %v65
    %v650 = vunpack.c.l.b16 %v66
    %v651 = vunpack.c.h.b16 %v66
    %v652 = vunpack.c.l.b16 %v67
    %v653 = vunpack.c.h.b16 %v67
    %v654 = vunpack.c.l.b16 %v68
    %v655 = vunpack.c.h.b16 %v68
    %v656 = vunpack.c.l.b16 %v69
    %v657 = vunpack.c.h.b16 %v69
    %v658 = vunpack.c.l.b16 %v70
    %v659 = vunpack.c.h.b16 %v70
    %v660 = vunpack.c.l.b16 %v71
    %v661 = vunpack.c.h.b16 %v71
    %v662 = vunpack.c.l.b16 %v72
    %v663 = vunpack.c.h.b16 %v72
    %v664 = vunpack.c.l.b16 %v73
    %v665 = vunpack.c.h.b16 %v73
    %v666 = vunpack.c.l.b16 %v74
    %v667 = vunpack.c.h.b16 %v74
    %v668 = vunpack.c.l.b16 %v75
    %v669 = vunpack.c.h.b16 %v75
    %v670 = vunpack.c.l.b16 %v76
    %v671 = vunpack.c.h.b16 %v76
    %v672 = vunpack.c.l.b16 %v77
    %v673 = vunpack.c.h.b16 %v77
    %v674 = vunpack.c.l.b16 %v78
    %v675 = vunpack.c.h.b16 %v78
    %v676 = vunpack.c.l.b16 %v79
    %v677 = vunpack.c.h.b16 %v79
    %v678 = vunpack.c.l.b16 %v80
    %v679 = vunpack.c.h.b16 %v80
    %v680 = vunpack.c.l.b16 %v81
    %v681 = vunpack.c.h.b16 %v81
    %v682 = vunpack.c.l.b16 %v82
    %v683 = vunpack.c.h.b16 %v82
    %v684 = vunpack.c.l.b16 %v83
    %v685 = vunpack.c.h.b16 %v83
    %v686 = vunpack.c.l.b16 %v84
    %v687 = vunpack.c.h.b16 %v84
    %v688 = vunpack.c.l.b16 %v85
    %v689 = vunpack.c.h.b16 %v85
    %v690 = vunpack.c.l.b16 %v86
    %v691 = vunpack.c.h.b16 %v86
    %v692 = vunpack.c.l.b16 %v87
    %v693 = vunpack.c.h.b16 %v87
    %v694 = vunpack.c.l.b16 %v88
    %v695 = vunpack.c.h.b16 %v88
    %v696 = vunpack.c.l.b16 %v89
    %v697 = vunpack.c.h.b16 %v89
    %v698 = vunpack.c.l.b16 %v90
    %v699 = vunpack.c.h.b16 %v90
    %v700 = vunpack.c.l.b16 %v91
    %v701 = vunpack.c.h.b16 %v91
    %v702 = vunpack.c.l.b16 %v92
    %v703 = vunpack.c.h.b16 %v92
    %v704 = vunpack.c.l.b16 %v93
    %v705 = vunpack.c.h.b16 %v93
    %v706 = vunpack.c.l.b16 %v94
    %v707 = vunpack.c.h.b16 %v94
    %v708 = vunpack.c.l.b16 %v95
    %v709 = vunpack.c.h.b16 %v95
    %v710 = vunpack.c.l.b16 %v96
    %v711 = vunpack.c.h.b16 %v96
    %v712 = vunpack.c.l.b16 %v97
    %v713 = vunpack.c.h.b16 %v97
    %v714 = vunpack.c.l.b16 %v98
    %v715 = vunpack.c.h.b16 %v98
    %v716 = vunpack.c.l.b16 %v99
    %v717 = vunpack.c.h.b16 %v99
    %v718 = vunpack.c.l.b16 %v100
    %v719 = vunpack.c.h.b16 %v100
    %v720 = vunpack.c.l.b16 %v101
    %v721 = vunpack.c.h.b16 %v101
    %v722 = vunpack.c.l.b16 %v102
    %v723 = vunpack.c.h.b16 %v102
    %v724 = vunpack.c.l.b16 %v103
    %v725 = vunpack.c.h.b16 %v103
    %v726 = vunpack.c.l.b16 %v104
    %v727 = vunpack.c.h.b16 %v104
    %v728 = vunpack.c.l.b16 %v105
    %v729 = vunpack.c.h.b16 %v105
    %v730 = vunpack.c.l.b16 %v106
    %v731 = vunpack.c.h.b16 %v106
    %v732 = vunpack.c.l.b16 %v107
    %v733 = vunpack.c.h.b16 %v107
    %v734 = vunpack.c.l.b16 %v108
    %v735 = vunpack.c.h.b16 %v108
    %v736 = vunpack.c.l.b16 %v109
    %v737 = vunpack.c.h.b16 %v109
    %v738 = vunpack.c.l.b16 %v110
    %v739 = vunpack.c.h.b16 %v110
    %v740 = vunpack.c.l.b16 %v111
    %v741 = vunpack.c.h.b16 %v111
    %v742 = vunpack.c.l.b16 %v112
    %v743 = vunpack.c.h.b16 %v112
    %v744 = vunpack.c.l.b16 %v113
    %v745 = vunpack.c.h.b16 %v113
    %v746 = vunpack.c.l.b16 %v114
    %v747 = vunpack.c.h.b16 %v114
    %v748 = vunpack.c.l.b16 %v115
    %v749 = vunpack.c.h.b16 %v115
    %v750 = vunpack.c.l.b16 %v116
    %v751 = vunpack.c.h.b16 %v116
    %v752 = vunpack.c.l.b16 %v117
    %v753 = vunpack.c.h.b16 %v117
    %v754 = vunpack.c.l.b16 %v118
    %v755 = vunpack.c.h.b16 %v118
    %v756 = vunpack.c.l.b16 %v119
    %v757 = vunpack.c.h.b16 %v119
    %v758 = vunpack.c.l.b16 %v120
    %v759 = vunpack.c.h.b16 %v120
    %v760 = vunpack.c.l.b16 %v121
    %v761 = vunpack.c.h.b16 %v121
    %v762 = vunpack.c.l.b16 %v122
    %v763 = vunpack.c.h.b16 %v122
    %v764 = vunpack.c.l.b16 %v123
    %v765 = vunpack.c.h.b16 %v123
    %v766 = vunpack.c.l.b16 %v124
    %v767 = vunpack.c.h.b16 %v124
    %v768 = vunpack.c.l.b16 %v125
    %v769 = vunpack.c.h.b16 %v125
    %v770 = vunpack.c.l.b16 %v126
    %v771 = vunpack.c.h.b16 %v126
    %v772 = vunpack.c.l.b16 %v127
    %v773 = vunpack.c.h.b16 %v127
    %v774 = vunpack.c.l.b16 %v128
    %v775 = vunpack.c.h.b16 %v128
    %v776 = vunpack.c.l.b16 %v129
    %v777 = vunpack.c.h.b16 %v129
    %v778 = vunpack.c.l.b16 %v130
    %v779 = vunpack.c.h.b16 %v130
    %v780 = vunpack.c.l.b16 %v131
    %v781 = vunpack.c.h.b16 %v131
    %v782 = vunpack.c.l.b16 %v132
    %v783 = vunpack.c.h.b16 %v132
    %v784 = vunpack.c.l.b16 %v133
    %v785 = vunpack.c.h.b16 %v133
    %v786 = vunpack.c.l.b16 %v134
    %v787 = vunpack.c.h.b16 %v134
    %v788 = vunpack.c.l.b16 %v135
    %v789 = vunpack.c.h.b16 %v135
    %v790 = vunpack.c.l.b16 %v136
    %v791 = vunpack.c.h.b16 %v136
    %v792 = vunpack.c.l.b16 %v137
    %v793 = vunpack.c.h.b16 %v137
    %v794 = vunpack.c.l.b16 %v138
    %v795 = vunpack.c.h.b16 %v138
    %v796 = vunpack.c.l.b16 %v139
    %v797 = vunpack.c.h.b16 %v139
    %v798 = vunpack.c.l.b16 %v140
    %v799 = vunpack.c.h.b16 %v140
    %v800 = vunpack.c.l.b16 %v141
    %v801 = vunpack.c.h.b16 %v141
    %v802 = vunpack.c.l.b16 %v142
    %v803 = vunpack.c.h.b16 %v142
    %v804 = vunpack.c.l.b16 %v143
    %v805 = vunpack.c.h.b16 %v143
    %v806 = vunpack.c.l.b16 %v144
    %v807 = vunpack.c.h.b16 %v144
    %v808 = vunpack.c.l.b16 %v145
    %v809 = vunpack.c.h.b16 %v145
    %v810 = vunpack.c.l.b16 %v146
    %v811 = vunpack.c.h.b16 %v146
    %v812 = vunpack.c.l.b16 %v147
    %v813 = vunpack.c.h.b16 %v147
    %v814 = vunpack.c.l.b16 %v148
    %v815 = vunpack.c.h.b16 %v148
    %v816 = vunpack.c.l.b16 %v149
    %v817 = vunpack.c.h.b16 %v149
    %v818 = vunpack.c.l.b16 %v150
    %v819 = vunpack.c.h.b16 %v150
    %v820 = vunpack.c.l.b16 %v151
    %v821 = vunpack.c.h.b16 %v151
    %v822 = vunpack.c.l.b16 %v152
    %v823 = vunpack.c.h.b16 %v152
    %v824 = vunpack.c.l.b16 %v153
    %v825 = vunpack.c.h.b16 %v153
    %v826 = vunpack.c.l.b16 %v154
    %v827 = vunpack.c.h.b16 %v154
    %v828 = vunpack.c.l.b16 %v155
    %v829 = vunpack.c.h.b16 %v155
    %v830 = vunpack.c.l.b16 %v156
    %v831 = vunpack.c.h.b16 %v156
    %v832 = vunpack.c.l.b16 %v157
    %v833 = vunpack.c.h.b16 %v157
    %v834 = vunpack.c.l.b16 %v158
    %v835 = vunpack.c.h.b16 %v158
    %v836 = vunpack.c.l.b16 %v159
    %v837 = vunpack.c.h.b16 %v159
    %v838 = vunpack.c.l.b16 %v160
    %v839 = vunpack.c.h.b16 %v160
    %v840 = vunpack.c.l.b16 %v161
    %v841 = vunpack.c.h.b16 %v161
    %v842 = vunpack.c.l.b16 %v162
    %v843 = vunpack.c.h.b16 %v162
    %v844 = vunpack.c.l.b16 %v163
    %v845 = vunpack.c.h.b16 %v163
    %v846 = vunpack.c.l.b16 %v164
    %v847 = vunpack.c.h.b16 %v164
    %v848 = vunpack.c.l.b16 %v165
    %v849 = vunpack.c.h.b16 %v165
    %v850 = vunpack.c.l.b16 %v166
    %v851 = vunpack.c.h.b16 %v166
    %v852 = vunpack.c.l.b16 %v167
    %v853 = vunpack.c.h.b16 %v167
    %v854 = vunpack.c.l.b16 %v168
    %v855 = vunpack.c.h.b16 %v168
    %v856 = vunpack.c.l.b16 %v169
    %v857 = vunpack.c.h.b16 %v169
    %v858 = vunpack.c.l.b16 %v170
    %v859 = vunpack.c.h.b16 %v170
    %v860 = vunpack.c.l.b16 %v171
    %v861 = vunpack.c.h.b16 %v171
    %v862 = vunpack.c.l.b16 %v172
    %v863 = vunpack.c.h.b16 %v172
    %v864 = vunpack.c.l.b16 %v173
    %v865 = vunpack.c.h.b16 %v173
    %v866 = vunpack.c.l.b16 %v174
    %v867 = vunpack.c.h.b16 %v174
    %v868 = vunpack.c.l.b16 %v175
    %v869 = vunpack.c.h.b16 %v175
    %v870 = vunpack.c.l.b16 %v176
    %v871 = vunpack.c.h.b16 %v176
    %v872 = vunpack.c.l.b16 %v177
    %v873 = vunpack.c.h.b16 %v177
    %v874 = vunpack.c.l.b16 %v178
    %v875 = vunpack.c.h.b16 %v178
    %v876 = vunpack.c.l.b16 %v179
    %v877 = vunpack.c.h.b16 %v179
    %v878 = vunpack.c.l.b16 %v180
    %v879 = vunpack.c.h.b16 %v180
    %v880 = vunpack.c.l.b16 %v181
    %v881 = vunpack.c.h.b16 %v181
    %v882 = vunpack.c.l.b16 %v182
    %v883 = vunpack.c.h.b16 %v182
    %v884 = vunpack.c.l.b16 %v183
    %v885 = vunpack.c.h.b16 %v183
    %v886 = vunpack.c.l.b16 %v184
    %v887 = vunpack.c.h.b16 %v184
    %v888 = vunpack.c.l.b16 %v185
    %v889 = vunpack.c.h.b16 %v185
    %v890 = vunpack.c.l.b16 %v186
    %v891 = vunpack.c.h.b16 %v186
    %v892 = vunpack.c.l.b16 %v187
    %v893 = vunpack.c.h.b16 %v187
    %v894 = vunpack.c.l.b16 %v188
    %v895 = vunpack.c.h.b16 %v188
    %v896 = vunpack.c.l.b16 %v189
    %v897 = vunpack.c.h.b16 %v189
    %v898 = vunpack.c.l.b16 %v190
    %v899 = vunpack.c.h.b16 %v190
    %v900 = vunpack.c.l.b16 %v191
    %v901 = vunpack.c.h.b16 %v191
    %v902 = vunpack.c.l.b16 %v192
    %v903 = vunpack.c.h.b16 %v192
    %v904 = vunpack.c.l.b16 %v193
    %v905 = vunpack.c.h.b16 %v193
    %v906 = vunpack.c.l.b16 %v194
    %v907 = vunpack.c.h.b16 %v194
    %v908 = vunpack.c.l.b16 %v195
    %v909 = vunpack.c.h.b16 %v195
    %v910 = vunpack.c.l.b16 %v196
    %v911 = vunpack.c.h.b16 %v196
    %v912 = vunpack.c.l.b16 %v197
    %v913 = vunpack.c.h.b16 %v197
    %v914 = vunpack.c.l.b16 %v198
    %v915 = vunpack.c.h.b16 %v198
    %v916 = vunpack.c.l.b16 %v199
    %v917 = vunpack.c.h.b16 %v199
    %v918 = vunpack.c.l.b16 %v200
    %v919 = vunpack.c.h.b16 %v200
    %v920 = vunpack.c.l.b16 %v201
    %v921 = vunpack.c.h.b16 %v201
    %v922 = vunpack.c.l.b16 %v202
    %v923 = vunpack.c.h.b16 %v202
    %v924 = vunpack.c.l.b16 %v203
    %v925 = vunpack.c.h.b16 %v203
    %v926 = vunpack.c.l.b16 %v204
    %v927 = vunpack.c.h.b16 %v204
    %v928 = vunpack.c.l.b16 %v205
    %v929 = vunpack.c.h.b16 %v205
    %v930 = vunpack.c.l.b16 %v206
    %v931 = vunpack.c.h.b16 %v206
    %v932 = vunpack.c.l.b16 %v207
    %v933 = vunpack.c.h.b16 %v207
    %v934 = vunpack.c.l.b16 %v208
    %v935 = vunpack.c.h.b16 %v208
    %v936 = vunpack.c.l.b16 %v209
    %v937 = vunpack.c.h.b16 %v209
    %v938 = vunpack.c.l.b16 %v210
    %v939 = vunpack.c.h.b16 %v210
    %v940 = vunpack.c.l.b16 %v211
    %v941 = vunpack.c.h.b16 %v211
    %v942 = vunpack.c.l.b16 %v212
    %v943 = vunpack.c.h.b16 %v212
    %v944 = vunpack.c.l.b16 %v213
    %v945 = vunpack.c.h.b16 %v213
    %v946 = vunpack.c.l.b16 %v214
    %v947 = vunpack.c.h.b16 %v214
    %v948 = vunpack.c.l.b16 %v215
    %v949 = vunpack.c.h.b16 %v215
    %v950 = vunpack.c.l.b16 %v216
    %v951 = vunpack.c.h.b16 %v216
    %v952 = vunpack.c.l.b16 %v217
    %v953 = vunpack.c.h.b16 %v217
    %v954 = vunpack.c.l.b16 %v218
    %v955 = vunpack.c.h.b16 %v218
    %v956 = vunpack.c.l.b16 %v219
    %v957 = vunpack.c.h.b16 %v219
    %v958 = vunpack.c.l.b16 %v220
    %v959 = vunpack.c.h.b16 %v220
    %v960 = vunpack.c.l.b16 %v221
    %v961 = vunpack.c.h.b16 %v221
    %v962 = vunpack.c.l.b16 %v222
    %v963 = vunpack.c.h.b16 %v222
    %v964 = vunpack.c.l.b16 %v223
    %v965 = vunpack.c.h.b16 %v223
    %v966 = vunpack.c.l.b16 %v224
    %v967 = vunpack.c.h.b16 %v224
    %v968 = vunpack.c.l.b16 %v225
    %v969 = vunpack.c.h.b16 %v225
    %v970 = vunpack.c.l.b16 %v226
    %v971 = vunpack.c.h.b16 %v226
    %v972 = vunpack.c.l.b16 %v227
    %v973 = vunpack.c.h.b16 %v227
    %v974 = vunpack.c.l.b16 %v228
    %v975 = vunpack.c.h.b16 %v228
    %v976 = vunpack.c.l.b16 %v229
    %v977 = vunpack.c.h.b16 %v229
    %v978 = vunpack.c.l.b16 %v230
    %v979 = vunpack.c.h.b16 %v230
    %v980 = vunpack.c.l.b16 %v231
    %v981 = vunpack.c.h.b16 %v231
    %v982 = vunpack.c.l.b16 %v232
    %v983 = vunpack.c.h.b16 %v232
    %v984 = vunpack.c.l.b16 %v233
    %v985 = vunpack.c.h.b16 %v233
    %v986 = vunpack.c.l.b16 %v234
    %v987 = vunpack.c.h.b16 %v234
    %v988 = vunpack.c.l.b16 %v235
    %v989 = vunpack.c.h.b16 %v235
    %v990 = vunpack.c.l.b16 %v236
    %v991 = vunpack.c.h.b16 %v236
    %v992 = vunpack.c.l.b16 %v237
    %v993 = vunpack.c.h.b16 %v237
    %v994 = vunpack.c.l.b16 %v238
    %v995 = vunpack.c.h.b16 %v238
    %v996 = vunpack.c.l.b16 %v239
    %v997 = vunpack.c.h.b16 %v239
    %v998 = vunpack.c.l.b16 %v240
    %v999 = vunpack.c.h.b16 %v240
    %v1000 = vunpack.c.l.b16 %v241
    %v1001 = vunpack.c.h.b16 %v241
    %v1002 = vunpack.c.l.b16 %v242
    %v1003 = vunpack.c.h.b16 %v242
    %v1004 = vunpack.c.l.b16 %v243
    %v1005 = vunpack.c.h.b16 %v243
    %v1006 = vunpack.c.l.b16 %v244
    %v1007 = vunpack.c.h.b16 %v244
    %v1008 = vunpack.c.l.b16 %v245
    %v1009 = vunpack.c.h.b16 %v245
    %v1010 = vunpack.c.l.b16 %v246
    %v1011 = vunpack.c.h.b16 %v246
    %v1012 = vunpack.c.l.b16 %v247
    %v1013 = vunpack.c.h.b16 %v247
    %v1014 = vunpack.c.l.b16 %v248
    %v1015 = vunpack.c.h.b16 %v248
    %v1016 = vunpack.c.l.b16 %v249
    %v1017 = vunpack.c.h.b16 %v249
    %v1018 = vunpack.c.l.b16 %v250
    %v1019 = vunpack.c.h.b16 %v250
    %v1020 = vunpack.c.l.b16 %v251
    %v1021 = vunpack.c.h.b16 %v251
    %v1022 = vunpack.c.l.b16 %v252
    %v1023 = vunpack.c.h.b16 %v252
    %v1024 = vunpack.c.l.b16 %v253
    %v1025 = vunpack.c.h.b16 %v253
    %v1026 = vunpack.c.l.b16 %v254
    %v1027 = vunpack.c.h.b16 %v254
    %v1028 = vunpack.c.l.b16 %v255
    %v1029 = vunpack.c.h.b16 %v255
    %v1030 = vunpack.c.l.b16 %v256
    %v1031 = vunpack.c.h.b16 %v256
    %v1032 = vunpack.c.l.b16 %v257
    %v1033 = vunpack.c.h.b16 %v257
    %v1034 = vunpack.c.l.b16 %v258
    %v1035 = vunpack.c.h.b16 %v258
    %v1036 = vunpack.c.l.b16 %v259
    %v1037 = vunpack.c.h.b16 %v259
    %v1038 = vunpack.c.l.b16 %v260
    %v1039 = vunpack.c.h.b16 %v260
    %v1040 = vunpack.c.l.b16 %v261
    %v1041 = vunpack.c.h.b16 %v261
    %v1042 = vunpack.c.l.b16 %v262
    %v1043 = vunpack.c.h.b16 %v262
    %v1044 = vunpack.c.l.b16 %v263
    %v1045 = vunpack.c.h.b16 %v263
    %v1046 = vunpack.c.l.b16 %v264
    %v1047 = vunpack.c.h.b16 %v264
    %v1048 = vunpack.c.l.b16 %v265
    %v1049 = vunpack.c.h.b16 %v265
    %v1050 = vunpack.c.l.b16 %v266
    %v1051 = vunpack.c.h.b16 %v266
    %v1052 = vunpack.c.l.b16 %v267
    %v1053 = vunpack.c.h.b16 %v267
    %v1054 = vunpack.c.l.b16 %v268
    %v1055 = vunpack.c.h.b16 %v268
    %v1056 = vunpack.c.l.b16 %v269
    %v1057 = vunpack.c.h.b16 %v269
    %v1058 = vunpack.c.l.b16 %v270
    %v1059 = vunpack.c.h.b16 %v270
    %v1060 = vunpack.c.l.b16 %v271
    %v1061 = vunpack.c.h.b16 %v271
    %v1062 = vunpack.c.l.b16 %v272
    %v1063 = vunpack.c.h.b16 %v272
    %v1064 = vunpack.c.l.b16 %v273
    %v1065 = vunpack.c.h.b16 %v273
    %v1066 = vunpack.c.l.b16 %v274
    %v1067 = vunpack.c.h.b16 %v274
    %v1068 = vunpack.c.l.b16 %v275
    %v1069 = vunpack.c.h.b16 %v275
    %v1070 = vunpack.c.l.b16 %v276
    %v1071 = vunpack.c.h.b16 %v276
    %v1072 = vunpack.c.l.b16 %v277
    %v1073 = vunpack.c.h.b16 %v277
    %v1074 = vunpack.c.l.b16 %v278
    %v1075 = vunpack.c.h.b16 %v278
    %v1076 = vunpack.c.l.b16 %v279
    %v1077 = vunpack.c.h.b16 %v279
    %v1078 = vunpack.c.l.b16 %v280
    %v1079 = vunpack.c.h.b16 %v280
    %v1080 = vunpack.c.l.b16 %v281
    %v1081 = vunpack.c.h.b16 %v281
    %v1082 = vunpack.c.l.b16 %v282
    %v1083 = vunpack.c.h.b16 %v282
    %v1084 = vunpack.c.l.b16 %v283
    %v1085 = vunpack.c.h.b16 %v283
    %v1086 = vunpack.c.l.b16 %v284
    %v1087 = vunpack.c.h.b16 %v284
    %v1088 = vunpack.c.l.b16 %v285
    %v1089 = vunpack.c.h.b16 %v285
    %v1090 = vunpack.c.l.b16 %v286
    %v1091 = vunpack.c.h.b16 %v286
    %v1092 = vunpack.c.l.b16 %v287
    %v1093 = vunpack.c.h.b16 %v287
    %v1094 = vunpack.c.l.b16 %v288
    %v1095 = vunpack.c.h.b16 %v288
    %v1096 = vunpack.c.l.b16 %v289
    %v1097 = vunpack.c.h.b16 %v289
    %v1098 = vunpack.c.l.b16 %v290
    %v1099 = vunpack.c.h.b16 %v290
    %v1100 = vunpack.c.l.b16 %v291
    %v1101 = vunpack.c.h.b16 %v291
    %v1102 = vunpack.c.l.b16 %v292
    %v1103 = vunpack.c.h.b16 %v292
    %v1104 = vunpack.c.l.b16 %v293
    %v1105 = vunpack.c.h.b16 %v293
    %v1106 = vunpack.c.l.b16 %v294
    %v1107 = vunpack.c.h.b16 %v294
    %v1108 = vunpack.c.l.b16 %v295
    %v1109 = vunpack.c.h.b16 %v295
    %v1110 = vunpack.c.l.b16 %v296
    %v1111 = vunpack.c.h.b16 %v296
    %v1112 = vunpack.c.l.b16 %v297
    %v1113 = vunpack.c.h.b16 %v297
    %v1114 = vunpack.c.l.b16 %v298
    %v1115 = vunpack.c.h.b16 %v298
    %v1116 = vunpack.c.l.b16 %v299
    %v1117 = vunpack.c.h.b16 %v299
    %v1118 = vpack.c.b16 %v610, %v606
    %v1119 = vpack.c.b16 %v611, %v607
    %v1120 = vpack.c.b16 %v612, %v608
    %v1121 = vpack.c.b16 %v613, %v609
    %v1122 = vpack.c.b16 %v618, %v614
    %v1123 = vpack.c.b16 %v619, %v615
    %v1124 = vpack.c.b16 %v620, %v616
    %v1125 = vpack.c.b16 %v621, %v617
    %v1126 = vpack.c.b16 %v626, %v622
    %v1127 = vpack.c.b16 %v627, %v623
    %v1128 = vpack.c.b16 %v628, %v624
    %v1129 = vpack.c.b16 %v629, %v625
    %v1130 = vpack.c.b16 %v634, %v630
    %v1131 = vpack.c.b16 %v635, %v631
    %v1132 = vpack.c.b16 %v636, %v632
    %v1133 = vpack.c.b16 %v637, %v633
    %v1134 = vpack.c.b16 %v642, %v638
    %v1135 = vpack.c.b16 %v643, %v639
    %v1136 = vpack.c.b16 %v644, %v640
    %v1137 = vpack.c.b16 %v645, %v641
    %v1138 = vpack.c.b16 %v650, %v646
    %v1139 = vpack.c.b16 %v651, %v647
    %v1140 = vpack.c.b16 %v652, %v648
    %v1141 = vpack.c.b16 %v653, %v649
    %v1142 = vpack.c.b16 %v658, %v654
    %v1143 = vpack.c.b16 %v659, %v655
    %v1144 = vpack.c.b16 %v660, %v656
    %v1145 = vpack.c.b16 %v661, %v657
    %v1146 = vpack.c.b16 %v666, %v662
    %v1147 = vpack.c.b16 %v667, %v663
    %v1148 = vpack.c.b16 %v668, %v664
    %v1149 = vpack.c.b16 %v669, %v665
    %v1150 = vpack.c.b16 %v674, %v670
    %v1151 = vpack.c.b16 %v675, %v671
    %v1152 = vpack.c.b16 %v676, %v672
    %v1153 = vpack.c.b16 %v677, %v673
    %v1154 = vpack.c.b16 %v682, %v678
    %v1155 = vpack.c.b16 %v683, %v679
    %v1156 = vpack.c.b16 %v684, %v680
    %v1157 = vpack.c.b16 %v685, %v681
    %v1158 = vpack.c.b16 %v690, %v686
    %v1159 = vpack.c.b16 %v691, %v687
    %v1160 = vpack.c.b16 %v692, %v688
    %v1161 = vpack.c.b16 %v693, %v689
    %v1162 = vpack.c.b16 %v698, %v694
    %v1163 = vpack.c.b16 %v699, %v695
    %v1164 = vpack.c.b16 %v700, %v696
    %v1165 = vpack.c.b16 %v701, %v697
    %v1166 = vpack.c.b16 %v706, %v702
    %v1167 = vpack.c.b16 %v707, %v703
    %v1168 = vpack.c.b16 %v708, %v704
    %v1169 = vpack.c.b16 %v709, %v705
    %v1170 = vpack.c.b16 %v714, %v710
    %v1171 = vpack.c.b16 %v715, %v711
    %v1172 = vpack.c.b16 %v716, %v712
    %v1173 = vpack.c.b16 %v717, %v713
    %v1174 = vpack.c.b16 %v722, %v718
    %v1175 = vpack.c.b16 %v723, %v719
    %v1176 = vpack.c.b16 %v724, %v720
    %v1177 = vpack.c.b16 %v725, %v721
    %v1178 = vpack.c.b16 %v730, %v726
    %v1179 = vpack.c.b16 %v731, %v727
    %v1180 = vpack.c.b16 %v732, %v728
    %v1181 = vpack.c.b16 %v733, %v729
    %v1182 = vpack.c.b16 %v738, %v734
    %v1183 = vpack.c.b16 %v739, %v735
    %v1184 = vpack.c.b16 %v740, %v736
    %v1185 = vpack.c.b16 %v741, %v737
    %v1186 = vpack.c.b16 %v746, %v742
    %v1187 = vpack.c.b16 %v747, %v743
    %v1188 = vpack.c.b16 %v748, %v744
    %v1189 = vpack.c.b16 %v749, %v745
    %v1190 = vpack.c.b16 %v754, %v750
    %v1191 = vpack.c.b16 %v755, %v751
    %v1192 = vpack.c.b16 %v756, %v752
    %v1193 = vpack.c.b16 %v757, %v753
    %v1194 = vpack.c.b16 %v762, %v758
    %v1195 = vpack.c.b16 %v763, %v759
    %v1196 = vpack.c.b16 %v764, %v760
    %v1197 = vpack.c.b16 %v765, %v761
    %v1198 = vpack.c.b16 %v770, %v766
    %v1199 = vpack.c.b16 %v771, %v767
    %v1200 = vpack.c.b16 %v772, %v768
    %v1201 = vpack.c.b16 %v773, %v769
    %v1202 = vpack.c.b16 %v778, %v774
    %v1203 = vpack.c.b16 %v779, %v775
    %v1204 = vpack.c.b16 %v780, %v776
    %v1205 = vpack.c.b16 %v781, %v777
    %v1206 = vpack.c.b16 %v786, %v782
    %v1207 = vpack.c.b16 %v787, %v783
    %v1208 = vpack.c.b16 %v788, %v784
    %v1209 = vpack.c.b16 %v789, %v785
    %v1210 = vpack.c.b16 %v794, %v790
    %v1211 = vpack.c.b16 %v795, %v791
    %v1212 = vpack.c.b16 %v796, %v792
    %v1213 = vpack.c.b16 %v797, %v793
    %v1214 = vpack.c.b16 %v802, %v798
    %v1215 = vpack.c.b16 %v803, %v799
    %v1216 = vpack.c.b16 %v804, %v800
    %v1217 = vpack.c.b16 %v805, %v801
    %v1218 = vpack.c.b16 %v810, %v806
    %v1219 = vpack.c.b16 %v811, %v807
    %v1220 = vpack.c.b16 %v812, %v808
    %v1221 = vpack.c.b16 %v813, %v809
    %v1222 = vpack.c.b16 %v818, %v814
    %v1223 = vpack.c.b16 %v819, %v815
    %v1224 = vpack.c.b16 %v820, %v816
    %v1225 = vpack.c.b16 %v821, %v817
    %v1226 = vpack.c.b16 %v826, %v822
    %v1227 = vpack.c.b16 %v827, %v823
    %v1228 = vpack.c.b16 %v828, %v824
    %v1229 = vpack.c.b16 %v829, %v825
    %v1230 = vpack.c.b16 %v834, %v830
    %v1231 = vpack.c.b16 %v835, %v831
    %v1232 = vpack.c.b16 %v836, %v832
    %v1233 = vpack.c.b16 %v837, %v833
    %v1234 = vpack.c.b16 %v842, %v838
    %v1235 = vpack.c.b16 %v843, %v839
    %v1236 = vpack.c.b16 %v844, %v840
    %v1237 = vpack.c.b16 %v845, %v841
    %v1238 = vpack.c.b16 %v850, %v846
    %v1239 = vpack.c.b16 %v851, %v847
    %v1240 = vpack.c.b16 %v852, %v848
    %v1241 = vpack.c.b16 %v853, %v849
    %v1242 = vpack.c.b16 %v858, %v854
    %v1243 = vpack.c.b16 %v859, %v855
    %v1244 = vpack.c.b16 %v860, %v856
    %v1245 = vpack.c.b16 %v861, %v857
    %v1246 = vpack.c.b16 %v866, %v862
    %v1247 = vpack.c.b16 %v867, %v863
    %v1248 = vpack.c.b16 %v868, %v864
    %v1249 = vpack.c.b16 %v869, %v865
    %v1250 = vpack.c.b16 %v874, %v870
    %v1251 = vpack.c.b16 %v875, %v871
    %v1252 = vpack.c.b16 %v876, %v872
    %v1253 = vpack.c.b16 %v877, %v873
    %v1254 = vpack.c.b16 %v882, %v878
    %v1255 = vpack.c.b16 %v883, %v879
    %v1256 = vpack.c.b16 %v884, %v880
    %v1257 = vpack.c.b16 %v885, %v881
    %v1258 = vpack.c.b16 %v890, %v886
    %v1259 = vpack.c.b16 %v891, %v887
    %v1260 = vpack.c.b16 %v892, %v888
    %v1261 = vpack.c.b16 %v893, %v889
    %v1262 = vpack.c.b16 %v898, %v894
    %v1263 = vpack.c.b16 %v899, %v895
    %v1264 = vpack.c.b16 %v900, %v896
    %v1265 = vpack.c.b16 %v901, %v897
    %v1266 = vpack.c.b16 %v906, %v902
    %v1267 = vpack.c.b16 %v907, %v903
    %v1268 = vpack.c.b16 %v908, %v904
    %v1269 = vpack.c.b16 %v909, %v905
    %v1270 = vpack.c.b16 %v914, %v910
    %v1271 = vpack.c.b16 %v915, %v911
    %v1272 = vpack.c.b16 %v916, %v912
    %v1273 = vpack.c.b16 %v917, %v913
    %v1274 = vpack.c.b16 %v922, %v918
    %v1275 = vpack.c.b16 %v923, %v919
    %v1276 = vpack.c.b16 %v924, %v920
    %v1277 = vpack.c.b16 %v925, %v921
    %v1278 = vpack.c.b16 %v930, %v926
    %v1279 = vpack.c.b16 %v931, %v927
    %v1280 = vpack.c.b16 %v932, %v928
    %v1281 = vpack.c.b16 %v933, %v929
    %v1282 = vpack.c.b16 %v938, %v934
    %v1283 = vpack.c.b16 %v939, %v935
    %v1284 = vpack.c.b16 %v940, %v936
    %v1285 = vpack.c.b16 %v941, %v937
    %v1286 = vpack.c.b16 %v946, %v942
    %v1287 = vpack.c.b16 %v947, %v943
    %v1288 = vpack.c.b16 %v948, %v944
    %v1289 = vpack.c.b16 %v949, %v945
    %v1290 = vpack.c.b16 %v954, %v950
    %v1291 = vpack.c.b16 %v955, %v951
    %v1292 = vpack.c.b16 %v956, %v952
    %v1293 = vpack.c.b16 %v957, %v953
    %v1294 = vpack.c.b16 %v962, %v958
    %v1295 = vpack.c.b16 %v963, %v959
    %v1296 = vpack.c.b16 %v964, %v960
    %v1297 = vpack.c.b16 %v965, %v961
    %v1298 = vpack.c.b16 %v970, %v966
    %v1299 = vpack.c.b16 %v971, %v967
    %v1300 = vpack.c.b16 %v972, %v968
    %v1301 = vpack.c.b16 %v973, %v969
    %v1302 = vpack.c.b16 %v978, %v974
    %v1303 = vpack.c.b16 %v979, %v975
    %v1304 = vpack.c.b16 %v980, %v976
    %v1305 = vpack.c.b16 %v981, %v977
    %v1306 = vpack.c.b16 %v986, %v982
    %v1307 = vpack.c.b16 %v987, %v983
    %v1308 = vpack.c.b16 %v988, %v984
    %v1309 = vpack.c.b16 %v989, %v985
    %v1310 = vpack.c.b16 %v994, %v990
    %v1311 = vpack.c.b16 %v995, %v991
    %v1312 = vpack.c.b16 %v996, %v992
    %v1313 = vpack.c.b16 %v997, %v993
    %v1314 = vpack.c.b16 %v1002, %v998
    %v1315 = vpack.c.b16 %v1003, %v999
    %v1316 = vpack.c.b16 %v1004, %v1000
    %v1317 = vpack.c.b16 %v1005, %v1001
    %v1318 = vpack.c.b16 %v1010, %v1006
    %v1319 = vpack.c.b16 %v1011, %v1007
    %v1320 = vpack.c.b16 %v1012, %v1008
    %v1321 = vpack.c.b16 %v1013, %v1009
    %v1322 = vpack.c.b16 %v1018, %v1014
    %v1323 = vpack.c.b16 %v1019, %v1015
    %v1324 = vpack.c.b16 %v1020, %v1016
    %v1325 = vpack.c.b16 %v1021, %v1017
    %v1326 = vpack.c.b16 %v1026, %v1022
    %v1327 = vpack.c.b16 %v1027, %v1023
    %v1328 = vpack.c.b16 %v1028, %v1024
    %v1329 = vpack.c.b16 %v1029, %v1025
    %v1330 = vpack.c.b16 %v1034, %v1030
    %v1331 = vpack.c.b16 %v1035, %v1031
    %v1332 = vpack.c.b16 %v1036, %v1032
    %v1333 = vpack.c.b16 %v1037, %v1033
    %v1334 = vpack.c.b16 %v1042, %v1038
    %v1335 = vpack.c.b16 %v1043, %v1039
    %v1336 = vpack.c.b16 %v1044, %v1040
    %v1337 = vpack.c.b16 %v1045, %v1041
    %v1338 = vpack.c.b16 %v1050, %v1046
    %v1339 = vpack.c.b16 %v1051, %v1047
    %v1340 = vpack.c.b16 %v1052, %v1048
    %v1341 = vpack.c.b16 %v1053, %v1049
    %v1342 = vpack.c.b16 %v1058, %v1054
    %v1343 = vpack.c.b16 %v1059, %v1055
    %v1344 = vpack.c.b16 %v1060, %v1056
    %v1345 = vpack.c.b16 %v1061, %v1057
    %v1346 = vpack.c.b16 %v1066, %v1062
    %v1347 = vpack.c.b16 %v1067, %v1063
    %v1348 = vpack.c.b16 %v1068, %v1064
    %v1349 = vpack.c.b16 %v1069, %v1065
    %v1350 = vpack.c.b16 %v1074, %v1070
    %v1351 = vpack.c.b16 %v1075, %v1071
    %v1352 = vpack.c.b16 %v1076, %v1072
    %v1353 = vpack.c.b16 %v1077, %v1073
    %v1354 = vpack.c.b16 %v1082, %v1078
    %v1355 = vpack.c.b16 %v1083, %v1079
    %v1356 = vpack.c.b16 %v1084, %v1080
    %v1357 = vpack.c.b16 %v1085, %v1081
    %v1358 = vpack.c.b16 %v1090, %v1086
    %v1359 = vpack.c.b16 %v1091, %v1087
    %v1360 = vpack.c.b16 %v1092, %v1088
    %v1361 = vpack.c.b16 %v1093, %v1089
    %v1362 = vpack.c.b16 %v1098, %v1094
    %v1363 = vpack.c.b16 %v1099, %v1095
    %v1364 = vpack.c.b16 %v1100, %v1096
    %v1365 = vpack.c.b16 %v1101, %v1097
    %v1366 = vpack.c.b16 %v1106, %v1102
    %v1367 = vpack.c.b16 %v1107, %v1103
    %v1368 = vpack.c.b16 %v1108, %v1104
    %v1369 = vpack.c.b16 %v1109, %v1105
    %v1370 = vpack.c.b16 %v1114, %v1110
    %v1371 = vpack.c.b16 %v1115, %v1111
    %v1372 = vpack.c.b16 %v1116, %v1112
    %v1373 = vpack.c.b16 %v1117, %v1113
    %1630 = vmatpush.bf16.msra.mxu0 %v1146
    %1631 = vmatpush.bf16.msra.mxu0 %v1142
    %1632 = vmatpush.bf16.msra.mxu0 %v1138
    %1633 = vmatpush.bf16.msra.mxu0 %v1134
    %1634 = vmatpush.bf16.msra.mxu0 %v1130
    %1635 = vmatpush.bf16.msra.mxu0 %v1126
    %1636 = vmatpush.bf16.msra.mxu0 %v1122
    %1637 = vmatpush.bf16.msra.mxu0 %v1118
    %1638 = vmatmul.bf16.gmra.mxu0 %v334
    %v1639 = vpop.f32.mrf.mxu0
    %v1640 = vadd.f32 %v302, %v1639
    %v1641 = vpop.f32.mrf.mxu0
    %v1642 = vadd.f32 %v302, %v1641
    %1643 = vdwg.mxu0
    %1644 = vmatpush.bf16.msra.mxu0 %v1178
    %1645 = vmatpush.bf16.msra.mxu0 %v1174
    %1646 = vmatpush.bf16.msra.mxu0 %v1170
    %1647 = vmatpush.bf16.msra.mxu0 %v1166
    %1648 = vmatpush.bf16.msra.mxu0 %v1162
    %1649 = vmatpush.bf16.msra.mxu0 %v1158
    %1650 = vmatpush.bf16.msra.mxu0 %v1154
    %1651 = vmatpush.bf16.msra.mxu0 %v1150
    %1652 = vmatmul.bf16.gmra.mxu0 %v335
    %v1653 = vpop.f32.mrf.mxu0
    %v1654 = vadd.f32 %v1640, %v1653
    %v1655 = vpop.f32.mrf.mxu0
    %v1656 = vadd.f32 %v1642, %v1655
    %1657 = vdwg.mxu0
    %1658 = vmatpush.bf16.msra.mxu0 %v1210
    %1659 = vmatpush.bf16.msra.mxu0 %v1206
    %1660 = vmatpush.bf16.msra.mxu0 %v1202
    %1661 = vmatpush.bf16.msra.mxu0 %v1198
    %1662 = vmatpush.bf16.msra.mxu0 %v1194
    %1663 = vmatpush.bf16.msra.mxu0 %v1190
    %1664 = vmatpush.bf16.msra.mxu0 %v1186
    %1665 = vmatpush.bf16.msra.mxu0 %v1182
    %1666 = vmatmul.bf16.gmra.mxu0 %v336
    %v1667 = vpop.f32.mrf.mxu0
    %v1668 = vadd.f32 %v1654, %v1667
    %v1669 = vpop.f32.mrf.mxu0
    %v1670 = vadd.f32 %v1656, %v1669
    %1671 = vdwg.mxu0
    %1672 = vmatpush.bf16.msra.mxu0 %v1242
    %1673 = vmatpush.bf16.msra.mxu0 %v1238
    %1674 = vmatpush.bf16.msra.mxu0 %v1234
    %1675 = vmatpush.bf16.msra.mxu0 %v1230
    %1676 = vmatpush.bf16.msra.mxu0 %v1226
    %1677 = vmatpush.bf16.msra.mxu0 %v1222
    %1678 = vmatpush.bf16.msra.mxu0 %v1218
    %1679 = vmatpush.bf16.msra.mxu0 %v1214
    %1680 = vmatmul.bf16.gmra.mxu0 %v337
    %v1681 = vpop.f32.mrf.mxu0
    %v1682 = vadd.f32 %v1668, %v1681
    %v1683 = vpop.f32.mrf.mxu0
    %v1684 = vadd.f32 %v1670, %v1683
    %1685 = vdwg.mxu0
    %1686 = vmatpush.bf16.msra.mxu0 %v1274
    %1687 = vmatpush.bf16.msra.mxu0 %v1270
    %1688 = vmatpush.bf16.msra.mxu0 %v1266
    %1689 = vmatpush.bf16.msra.mxu0 %v1262
    %1690 = vmatpush.bf16.msra.mxu0 %v1258
    %1691 = vmatpush.bf16.msra.mxu0 %v1254
    %1692 = vmatpush.bf16.msra.mxu0 %v1250
    %1693 = vmatpush.bf16.msra.mxu0 %v1246
    %1694 = vmatmul.bf16.gmra.mxu0 %v338
    %v1695 = vpop.f32.mrf.mxu0
    %v1696 = vadd.f32 %v1682, %v1695
    %v1697 = vpop.f32.mrf.mxu0
    %v1698 = vadd.f32 %v1684, %v1697
    %1699 = vdwg.mxu0
    %1700 = vmatpush.bf16.msra.mxu0 %v1306
    %1701 = vmatpush.bf16.msra.mxu0 %v1302
    %1702 = vmatpush.bf16.msra.mxu0 %v1298
    %1703 = vmatpush.bf16.msra.mxu0 %v1294
    %1704 = vmatpush.bf16.msra.mxu0 %v1290
    %1705 = vmatpush.bf16.msra.mxu0 %v1286
    %1706 = vmatpush.bf16.msra.mxu0 %v1282
    %1707 = vmatpush.bf16.msra.mxu0 %v1278
    %1708 = vmatmul.bf16.gmra.mxu0 %v339
    %v1709 = vpop.f32.mrf.mxu0
    %v1710 = vadd.f32 %v1696, %v1709
    %v1711 = vpop.f32.mrf.mxu0
    %v1712 = vadd.f32 %v1698, %v1711
    %1713 = vdwg.mxu0
    %1714 = vmatpush.bf16.msra.mxu0 %v1338
    %1715 = vmatpush.bf16.msra.mxu0 %v1334
    %1716 = vmatpush.bf16.msra.mxu0 %v1330
    %1717 = vmatpush.bf16.msra.mxu0 %v1326
    %1718 = vmatpush.bf16.msra.mxu0 %v1322
    %1719 = vmatpush.bf16.msra.mxu0 %v1318
    %1720 = vmatpush.bf16.msra.mxu0 %v1314
    %1721 = vmatpush.bf16.msra.mxu0 %v1310
    %1722 = vmatmul.bf16.gmra.mxu0 %v340
    %v1723 = vpop.f32.mrf.mxu0
    %v1724 = vadd.f32 %v1710, %v1723
    %v1725 = vpop.f32.mrf.mxu0
    %v1726 = vadd.f32 %v1712, %v1725
    %1727 = vdwg.mxu0
    %1728 = vmatpush.bf16.msra.mxu0 %v1370
    %1729 = vmatpush.bf16.msra.mxu0 %v1366
    %1730 = vmatpush.bf16.msra.mxu0 %v1362
    %1731 = vmatpush.bf16.msra.mxu0 %v1358
    %1732 = vmatpush.bf16.msra.mxu0 %v1354
    %1733 = vmatpush.bf16.msra.mxu0 %v1350
    %1734 = vmatpush.bf16.msra.mxu0 %v1346
    %1735 = vmatpush.bf16.msra.mxu0 %v1342
    %1736 = vmatmul.bf16.gmra.mxu0 %v341
    %v1737 = vpop.f32.mrf.mxu0
    %v1738 = vadd.f32 %v1724, %v1737
    %v1739 = vpop.f32.mrf.mxu0
    %v1740 = vadd.f32 %v1726, %v1739
    %1741 = vdwg.mxu0
    %1742 = vmatpush.bf16.msra.mxu0 %v1147
    %1743 = vmatpush.bf16.msra.mxu0 %v1143
    %1744 = vmatpush.bf16.msra.mxu0 %v1139
    %1745 = vmatpush.bf16.msra.mxu0 %v1135
    %1746 = vmatpush.bf16.msra.mxu0 %v1131
    %1747 = vmatpush.bf16.msra.mxu0 %v1127
    %1748 = vmatpush.bf16.msra.mxu0 %v1123
    %1749 = vmatpush.bf16.msra.mxu0 %v1119
    %1750 = vmatmul.bf16.gmra.mxu0 %v334
    %v1751 = vpop.f32.mrf.mxu0
    %v1752 = vadd.f32 %v303, %v1751
    %v1753 = vpop.f32.mrf.mxu0
    %v1754 = vadd.f32 %v303, %v1753
    %1755 = vdwg.mxu0
    %1756 = vmatpush.bf16.msra.mxu0 %v1179
    %1757 = vmatpush.bf16.msra.mxu0 %v1175
    %1758 = vmatpush.bf16.msra.mxu0 %v1171
    %1759 = vmatpush.bf16.msra.mxu0 %v1167
    %1760 = vmatpush.bf16.msra.mxu0 %v1163
    %1761 = vmatpush.bf16.msra.mxu0 %v1159
    %1762 = vmatpush.bf16.msra.mxu0 %v1155
    %1763 = vmatpush.bf16.msra.mxu0 %v1151
    %1764 = vmatmul.bf16.gmra.mxu0 %v335
    %v1765 = vpop.f32.mrf.mxu0
    %v1766 = vadd.f32 %v1752, %v1765
    %v1767 = vpop.f32.mrf.mxu0
    %v1768 = vadd.f32 %v1754, %v1767
    %1769 = vdwg.mxu0
    %1770 = vmatpush.bf16.msra.mxu0 %v1211
    %1771 = vmatpush.bf16.msra.mxu0 %v1207
    %1772 = vmatpush.bf16.msra.mxu0 %v1203
    %1773 = vmatpush.bf16.msra.mxu0 %v1199
    %1774 = vmatpush.bf16.msra.mxu0 %v1195
    %1775 = vmatpush.bf16.msra.mxu0 %v1191
    %1776 = vmatpush.bf16.msra.mxu0 %v1187
    %1777 = vmatpush.bf16.msra.mxu0 %v1183
    %1778 = vmatmul.bf16.gmra.mxu0 %v336
    %v1779 = vpop.f32.mrf.mxu0
    %v1780 = vadd.f32 %v1766, %v1779
    %v1781 = vpop.f32.mrf.mxu0
    %v1782 = vadd.f32 %v1768, %v1781
    %1783 = vdwg.mxu0
    %1784 = vmatpush.bf16.msra.mxu0 %v1243
    %1785 = vmatpush.bf16.msra.mxu0 %v1239
    %1786 = vmatpush.bf16.msra.mxu0 %v1235
    %1787 = vmatpush.bf16.msra.mxu0 %v1231
    %1788 = vmatpush.bf16.msra.mxu0 %v1227
    %1789 = vmatpush.bf16.msra.mxu0 %v1223
    %1790 = vmatpush.bf16.msra.mxu0 %v1219
    %1791 = vmatpush.bf16.msra.mxu0 %v1215
    %1792 = vmatmul.bf16.gmra.mxu0 %v337
    %v1793 = vpop.f32.mrf.mxu0
    %v1794 = vadd.f32 %v1780, %v1793
    %v1795 = vpop.f32.mrf.mxu0
    %v1796 = vadd.f32 %v1782, %v1795
    %1797 = vdwg.mxu0
    %1798 = vmatpush.bf16.msra.mxu0 %v1275
    %1799 = vmatpush.bf16.msra.mxu0 %v1271
    %1800 = vmatpush.bf16.msra.mxu0 %v1267
    %1801 = vmatpush.bf16.msra.mxu0 %v1263
    %1802 = vmatpush.bf16.msra.mxu0 %v1259
    %1803 = vmatpush.bf16.msra.mxu0 %v1255
    %1804 = vmatpush.bf16.msra.mxu0 %v1251
    %1805 = vmatpush.bf16.msra.mxu0 %v1247
    %1806 = vmatmul.bf16.gmra.mxu0 %v338
    %v1807 = vpop.f32.mrf.mxu0
    %v1808 = vadd.f32 %v1794, %v1807
    %v1809 = vpop.f32.mrf.mxu0
    %v1810 = vadd.f32 %v1796, %v1809
    %1811 = vdwg.mxu0
    %1812 = vmatpush.bf16.msra.mxu0 %v1307
    %1813 = vmatpush.bf16.msra.mxu0 %v1303
    %1814 = vmatpush.bf16.msra.mxu0 %v1299
    %1815 = vmatpush.bf16.msra.mxu0 %v1295
    %1816 = vmatpush.bf16.msra.mxu0 %v1291
    %1817 = vmatpush.bf16.msra.mxu0 %v1287
    %1818 = vmatpush.bf16.msra.mxu0 %v1283
    %1819 = vmatpush.bf16.msra.mxu0 %v1279
    %1820 = vmatmul.bf16.gmra.mxu0 %v339
    %v1821 = vpop.f32.mrf.mxu0
    %v1822 = vadd.f32 %v1808, %v1821
    %v1823 = vpop.f32.mrf.mxu0
    %v1824 = vadd.f32 %v1810, %v1823
    %1825 = vdwg.mxu0
    %1826 = vmatpush.bf16.msra.mxu0 %v1339
    %1827 = vmatpush.bf16.msra.mxu0 %v1335
    %1828 = vmatpush.bf16.msra.mxu0 %v1331
    %1829 = vmatpush.bf16.msra.mxu0 %v1327
    %1830 = vmatpush.bf16.msra.mxu0 %v1323
    %1831 = vmatpush.bf16.msra.mxu0 %v1319
    %1832 = vmatpush.bf16.msra.mxu0 %v1315
    %1833 = vmatpush.bf16.msra.mxu0 %v1311
    %1834 = vmatmul.bf16.gmra.mxu0 %v340
    %v1835 = vpop.f32.mrf.mxu0
    %v1836 = vadd.f32 %v1822, %v1835
    %v1837 = vpop.f32.mrf.mxu0
    %v1838 = vadd.f32 %v1824, %v1837
    %1839 = vdwg.mxu0
    %1840 = vmatpush.bf16.msra.mxu0 %v1371
    %1841 = vmatpush.bf16.msra.mxu0 %v1367
    %1842 = vmatpush.bf16.msra.mxu0 %v1363
    %1843 = vmatpush.bf16.msra.mxu0 %v1359
    %1844 = vmatpush.bf16.msra.mxu0 %v1355
    %1845 = vmatpush.bf16.msra.mxu0 %v1351
    %1846 = vmatpush.bf16.msra.mxu0 %v1347
    %1847 = vmatpush.bf16.msra.mxu0 %v1343
    %1848 = vmatmul.bf16.gmra.mxu0 %v341
    %v1849 = vpop.f32.mrf.mxu0
    %v1850 = vadd.f32 %v1836, %v1849
    %v1851 = vpop.f32.mrf.mxu0
    %v1852 = vadd.f32 %v1838, %v1851
    %1853 = vdwg.mxu0
    %1854 = vmatpush.bf16.msra.mxu0 %v1148
    %1855 = vmatpush.bf16.msra.mxu0 %v1144
    %1856 = vmatpush.bf16.msra.mxu0 %v1140
    %1857 = vmatpush.bf16.msra.mxu0 %v1136
    %1858 = vmatpush.bf16.msra.mxu0 %v1132
    %1859 = vmatpush.bf16.msra.mxu0 %v1128
    %1860 = vmatpush.bf16.msra.mxu0 %v1124
    %1861 = vmatpush.bf16.msra.mxu0 %v1120
    %1862 = vmatmul.bf16.gmra.mxu0 %v334
    %v1863 = vpop.f32.mrf.mxu0
    %v1864 = vadd.f32 %v304, %v1863
    %v1865 = vpop.f32.mrf.mxu0
    %v1866 = vadd.f32 %v304, %v1865
    %1867 = vdwg.mxu0
    %1868 = vmatpush.bf16.msra.mxu0 %v1180
    %1869 = vmatpush.bf16.msra.mxu0 %v1176
    %1870 = vmatpush.bf16.msra.mxu0 %v1172
    %1871 = vmatpush.bf16.msra.mxu0 %v1168
    %1872 = vmatpush.bf16.msra.mxu0 %v1164
    %1873 = vmatpush.bf16.msra.mxu0 %v1160
    %1874 = vmatpush.bf16.msra.mxu0 %v1156
    %1875 = vmatpush.bf16.msra.mxu0 %v1152
    %1876 = vmatmul.bf16.gmra.mxu0 %v335
    %v1877 = vpop.f32.mrf.mxu0
    %v1878 = vadd.f32 %v1864, %v1877
    %v1879 = vpop.f32.mrf.mxu0
    %v1880 = vadd.f32 %v1866, %v1879
    %1881 = vdwg.mxu0
    %1882 = vmatpush.bf16.msra.mxu0 %v1212
    %1883 = vmatpush.bf16.msra.mxu0 %v1208
    %1884 = vmatpush.bf16.msra.mxu0 %v1204
    %1885 = vmatpush.bf16.msra.mxu0 %v1200
    %1886 = vmatpush.bf16.msra.mxu0 %v1196
    %1887 = vmatpush.bf16.msra.mxu0 %v1192
    %1888 = vmatpush.bf16.msra.mxu0 %v1188
    %1889 = vmatpush.bf16.msra.mxu0 %v1184
    %1890 = vmatmul.bf16.gmra.mxu0 %v336
    %v1891 = vpop.f32.mrf.mxu0
    %v1892 = vadd.f32 %v1878, %v1891
    %v1893 = vpop.f32.mrf.mxu0
    %v1894 = vadd.f32 %v1880, %v1893
    %1895 = vdwg.mxu0
    %1896 = vmatpush.bf16.msra.mxu0 %v1244
    %1897 = vmatpush.bf16.msra.mxu0 %v1240
    %1898 = vmatpush.bf16.msra.mxu0 %v1236
    %1899 = vmatpush.bf16.msra.mxu0 %v1232
    %1900 = vmatpush.bf16.msra.mxu0 %v1228
    %1901 = vmatpush.bf16.msra.mxu0 %v1224
    %1902 = vmatpush.bf16.msra.mxu0 %v1220
    %1903 = vmatpush.bf16.msra.mxu0 %v1216
    %1904 = vmatmul.bf16.gmra.mxu0 %v337
    %v1905 = vpop.f32.mrf.mxu0
    %v1906 = vadd.f32 %v1892, %v1905
    %v1907 = vpop.f32.mrf.mxu0
    %v1908 = vadd.f32 %v1894, %v1907
    %1909 = vdwg.mxu0
    %1910 = vmatpush.bf16.msra.mxu0 %v1276
    %1911 = vmatpush.bf16.msra.mxu0 %v1272
    %1912 = vmatpush.bf16.msra.mxu0 %v1268
    %1913 = vmatpush.bf16.msra.mxu0 %v1264
    %1914 = vmatpush.bf16.msra.mxu0 %v1260
    %1915 = vmatpush.bf16.msra.mxu0 %v1256
    %1916 = vmatpush.bf16.msra.mxu0 %v1252
    %1917 = vmatpush.bf16.msra.mxu0 %v1248
    %1918 = vmatmul.bf16.gmra.mxu0 %v338
    %v1919 = vpop.f32.mrf.mxu0
    %v1920 = vadd.f32 %v1906, %v1919
    %v1921 = vpop.f32.mrf.mxu0
    %v1922 = vadd.f32 %v1908, %v1921
    %1923 = vdwg.mxu0
    %1924 = vmatpush.bf16.msra.mxu0 %v1308
    %1925 = vmatpush.bf16.msra.mxu0 %v1304
    %1926 = vmatpush.bf16.msra.mxu0 %v1300
    %1927 = vmatpush.bf16.msra.mxu0 %v1296
    %1928 = vmatpush.bf16.msra.mxu0 %v1292
    %1929 = vmatpush.bf16.msra.mxu0 %v1288
    %1930 = vmatpush.bf16.msra.mxu0 %v1284
    %1931 = vmatpush.bf16.msra.mxu0 %v1280
    %1932 = vmatmul.bf16.gmra.mxu0 %v339
    %v1933 = vpop.f32.mrf.mxu0
    %v1934 = vadd.f32 %v1920, %v1933
    %v1935 = vpop.f32.mrf.mxu0
    %v1936 = vadd.f32 %v1922, %v1935
    %1937 = vdwg.mxu0
    %1938 = vmatpush.bf16.msra.mxu0 %v1340
    %1939 = vmatpush.bf16.msra.mxu0 %v1336
    %1940 = vmatpush.bf16.msra.mxu0 %v1332
    %1941 = vmatpush.bf16.msra.mxu0 %v1328
    %1942 = vmatpush.bf16.msra.mxu0 %v1324
    %1943 = vmatpush.bf16.msra.mxu0 %v1320
    %1944 = vmatpush.bf16.msra.mxu0 %v1316
    %1945 = vmatpush.bf16.msra.mxu0 %v1312
    %1946 = vmatmul.bf16.gmra.mxu0 %v340
    %v1947 = vpop.f32.mrf.mxu0
    %v1948 = vadd.f32 %v1934, %v1947
    %v1949 = vpop.f32.mrf.mxu0
    %v1950 = vadd.f32 %v1936, %v1949
    %1951 = vdwg.mxu0
    %1952 = vmatpush.bf16.msra.mxu0 %v1372
    %1953 = vmatpush.bf16.msra.mxu0 %v1368
    %1954 = vmatpush.bf16.msra.mxu0 %v1364
    %1955 = vmatpush.bf16.msra.mxu0 %v1360
    %1956 = vmatpush.bf16.msra.mxu0 %v1356
    %1957 = vmatpush.bf16.msra.mxu0 %v1352
    %1958 = vmatpush.bf16.msra.mxu0 %v1348
    %1959 = vmatpush.bf16.msra.mxu0 %v1344
    %1960 = vmatmul.bf16.gmra.mxu0 %v341
    %v1961 = vpop.f32.mrf.mxu0
    %v1962 = vadd.f32 %v1948, %v1961
    %v1963 = vpop.f32.mrf.mxu0
    %v1964 = vadd.f32 %v1950, %v1963
    %1965 = vdwg.mxu0
    %1966 = vmatpush.bf16.msra.mxu0 %v1149
    %1967 = vmatpush.bf16.msra.mxu0 %v1145
    %1968 = vmatpush.bf16.msra.mxu0 %v1141
    %1969 = vmatpush.bf16.msra.mxu0 %v1137
    %1970 = vmatpush.bf16.msra.mxu0 %v1133
    %1971 = vmatpush.bf16.msra.mxu0 %v1129
    %1972 = vmatpush.bf16.msra.mxu0 %v1125
    %1973 = vmatpush.bf16.msra.mxu0 %v1121
    %1974 = vmatmul.bf16.gmra.mxu0 %v334
    %v1975 = vpop.f32.mrf.mxu0
    %v1976 = vadd.f32 %v305, %v1975
    %v1977 = vpop.f32.mrf.mxu0
    %v1978 = vadd.f32 %v305, %v1977
    %1979 = vdwg.mxu0
    %1980 = vmatpush.bf16.msra.mxu0 %v1181
    %1981 = vmatpush.bf16.msra.mxu0 %v1177
    %1982 = vmatpush.bf16.msra.mxu0 %v1173
    %1983 = vmatpush.bf16.msra.mxu0 %v1169
    %1984 = vmatpush.bf16.msra.mxu0 %v1165
    %1985 = vmatpush.bf16.msra.mxu0 %v1161
    %1986 = vmatpush.bf16.msra.mxu0 %v1157
    %1987 = vmatpush.bf16.msra.mxu0 %v1153
    %1988 = vmatmul.bf16.gmra.mxu0 %v335
    %v1989 = vpop.f32.mrf.mxu0
    %v1990 = vadd.f32 %v1976, %v1989
    %v1991 = vpop.f32.mrf.mxu0
    %v1992 = vadd.f32 %v1978, %v1991
    %1993 = vdwg.mxu0
    %1994 = vmatpush.bf16.msra.mxu0 %v1213
    %1995 = vmatpush.bf16.msra.mxu0 %v1209
    %1996 = vmatpush.bf16.msra.mxu0 %v1205
    %1997 = vmatpush.bf16.msra.mxu0 %v1201
    %1998 = vmatpush.bf16.msra.mxu0 %v1197
    %1999 = vmatpush.bf16.msra.mxu0 %v1193
    %2000 = vmatpush.bf16.msra.mxu0 %v1189
    %2001 = vmatpush.bf16.msra.mxu0 %v1185
    %2002 = vmatmul.bf16.gmra.mxu0 %v336
    %v2003 = vpop.f32.mrf.mxu0
    %v2004 = vadd.f32 %v1990, %v2003
    %v2005 = vpop.f32.mrf.mxu0
    %v2006 = vadd.f32 %v1992, %v2005
    %2007 = vdwg.mxu0
    %2008 = vmatpush.bf16.msra.mxu0 %v1245
    %2009 = vmatpush.bf16.msra.mxu0 %v1241
    %2010 = vmatpush.bf16.msra.mxu0 %v1237
    %2011 = vmatpush.bf16.msra.mxu0 %v1233
    %2012 = vmatpush.bf16.msra.mxu0 %v1229
    %2013 = vmatpush.bf16.msra.mxu0 %v1225
    %2014 = vmatpush.bf16.msra.mxu0 %v1221
    %2015 = vmatpush.bf16.msra.mxu0 %v1217
    %2016 = vmatmul.bf16.gmra.mxu0 %v337
    %v2017 = vpop.f32.mrf.mxu0
    %v2018 = vadd.f32 %v2004, %v2017
    %v2019 = vpop.f32.mrf.mxu0
    %v2020 = vadd.f32 %v2006, %v2019
    %2021 = vdwg.mxu0
    %2022 = vmatpush.bf16.msra.mxu0 %v1277
    %2023 = vmatpush.bf16.msra.mxu0 %v1273
    %2024 = vmatpush.bf16.msra.mxu0 %v1269
    %2025 = vmatpush.bf16.msra.mxu0 %v1265
    %2026 = vmatpush.bf16.msra.mxu0 %v1261
    %2027 = vmatpush.bf16.msra.mxu0 %v1257
    %2028 = vmatpush.bf16.msra.mxu0 %v1253
    %2029 = vmatpush.bf16.msra.mxu0 %v1249
    %2030 = vmatmul.bf16.gmra.mxu0 %v338
    %v2031 = vpop.f32.mrf.mxu0
    %v2032 = vadd.f32 %v2018, %v2031
    %v2033 = vpop.f32.mrf.mxu0
    %v2034 = vadd.f32 %v2020, %v2033
    %2035 = vdwg.mxu0
    %2036 = vmatpush.bf16.msra.mxu0 %v1309
    %2037 = vmatpush.bf16.msra.mxu0 %v1305
    %2038 = vmatpush.bf16.msra.mxu0 %v1301
    %2039 = vmatpush.bf16.msra.mxu0 %v1297
    %2040 = vmatpush.bf16.msra.mxu0 %v1293
    %2041 = vmatpush.bf16.msra.mxu0 %v1289
    %2042 = vmatpush.bf16.msra.mxu0 %v1285
    %2043 = vmatpush.bf16.msra.mxu0 %v1281
    %2044 = vmatmul.bf16.gmra.mxu0 %v339
    %v2045 = vpop.f32.mrf.mxu0
    %v2046 = vadd.f32 %v2032, %v2045
    %v2047 = vpop.f32.mrf.mxu0
    %v2048 = vadd.f32 %v2034, %v2047
    %2049 = vdwg.mxu0
    %2050 = vmatpush.bf16.msra.mxu0 %v1341
    %2051 = vmatpush.bf16.msra.mxu0 %v1337
    %2052 = vmatpush.bf16.msra.mxu0 %v1333
    %2053 = vmatpush.bf16.msra.mxu0 %v1329
    %2054 = vmatpush.bf16.msra.mxu0 %v1325
    %2055 = vmatpush.bf16.msra.mxu0 %v1321
    %2056 = vmatpush.bf16.msra.mxu0 %v1317
    %2057 = vmatpush.bf16.msra.mxu0 %v1313
    %2058 = vmatmul.bf16.gmra.mxu0 %v340
    %v2059 = vpop.f32.mrf.mxu0
    %v2060 = vadd.f32 %v2046, %v2059
    %v2061 = vpop.f32.mrf.mxu0
    %v2062 = vadd.f32 %v2048, %v2061
    %2063 = vdwg.mxu0
    %2064 = vmatpush.bf16.msra.mxu0 %v1373
    %2065 = vmatpush.bf16.msra.mxu0 %v1369
    %2066 = vmatpush.bf16.msra.mxu0 %v1365
    %2067 = vmatpush.bf16.msra.mxu0 %v1361
    %2068 = vmatpush.bf16.msra.mxu0 %v1357
    %2069 = vmatpush.bf16.msra.mxu0 %v1353
    %2070 = vmatpush.bf16.msra.mxu0 %v1349
    %2071 = vmatpush.bf16.msra.mxu0 %v1345
    %2072 = vmatmul.bf16.gmra.mxu0 %v341
    %v2073 = vpop.f32.mrf.mxu0
    %v2074 = vadd.f32 %v2060, %v2073
    %v2075 = vpop.f32.mrf.mxu0
    %v2076 = vadd.f32 %v2062, %v2075
    %2077 = vdwg.mxu0
    %v2078 = vmax.f32 %v1738, 0.0
    %v2079 = vmax.f32 %v1850, 0.0
    %v2080 = vmax.f32 %v1962, 0.0
    %v2081 = vmax.f32 %v2074, 0.0
    %v2082 = vmax.f32 %v1740, 0.0
    %v2083 = vmax.f32 %v1852, 0.0
    %v2084 = vmax.f32 %v1964, 0.0
    %v2085 = vmax.f32 %v2076, 0.0
    %v2086 = vpack.c.bf16 %v2082, %v2078
    %v2087 = vpack.c.bf16 %v2083, %v2079
    %v2088 = vpack.c.bf16 %v2084, %v2080
    %v2089 = vpack.c.bf16 %v2085, %v2081
    %v2090 = vld [vmem:[%s3] sm:$0xf]
    %v2091 = vld [vmem:[%s3 + $0x4] sm:$0xf]
    %v2092 = vld [vmem:[%s3 + $0x8] sm:$0xf]
    %v2093 = vld [vmem:[%s3 + $0xc] sm:$0xf]
    %v2094 = vld [vmem:[%s3 + $0x10] sm:$0xf]
    %v2095 = vld [vmem:[%s3 + $0x14] sm:$0xf]
    %v2096 = vld [vmem:[%s3 + $0x18] sm:$0xf]
    %v2097 = vld [vmem:[%s3 + $0x1c] sm:$0xf]
    %v2098 = vld [vmem:[%s3 + $0x20] sm:$0xf]
    %v2099 = vld [vmem:[%s3 + $0x24] sm:$0xf]
    %v2100 = vld [vmem:[%s3 + $0x28] sm:$0xf]
    %v2101 = vld [vmem:[%s3 + $0x2c] sm:$0xf]
    %v2102 = vld [vmem:[%s3 + $0x30] sm:$0xf]
    %v2103 = vld [vmem:[%s3 + $0x34] sm:$0xf]
    %v2104 = vld [vmem:[%s3 + $0x38] sm:$0xf]
    %v2105 = vld [vmem:[%s3 + $0x3c] sm:$0xf]
    %v2106 = vld [vmem:[%s3 + $0x40] sm:$0xf]
    %v2107 = vld [vmem:[%s3 + $0x44] sm:$0xf]
    %v2108 = vld [vmem:[%s3 + $0x48] sm:$0xf]
    %v2109 = vld [vmem:[%s3 + $0x4c] sm:$0xf]
    %v2110 = vld [vmem:[%s3 + $0x50] sm:$0xf]
    %v2111 = vld [vmem:[%s3 + $0x54] sm:$0xf]
    %v2112 = vld [vmem:[%s3 + $0x58] sm:$0xf]
    %v2113 = vld [vmem:[%s3 + $0x5c] sm:$0xf]
    %v2114 = vld [vmem:[%s3 + $0x60] sm:$0xf]
    %v2115 = vld [vmem:[%s3 + $0x64] sm:$0xf]
    %v2116 = vld [vmem:[%s3 + $0x68] sm:$0xf]
    %v2117 = vld [vmem:[%s3 + $0x6c] sm:$0xf]
    %v2118 = vld [vmem:[%s3 + $0x70] sm:$0xf]
    %v2119 = vld [vmem:[%s3 + $0x74] sm:$0xf]
    %v2120 = vld [vmem:[%s3 + $0x78] sm:$0xf]
    %v2121 = vld [vmem:[%s3 + $0x7c] sm:$0xf]
    %v2122 = vld [vmem:[%s3 + $0x80] sm:$0xf]
    %v2123 = vld [vmem:[%s3 + $0x84] sm:$0xf]
    %v2124 = vld [vmem:[%s3 + $0x88] sm:$0xf]
    %v2125 = vld [vmem:[%s3 + $0x8c] sm:$0xf]
    %v2126 = vld [vmem:[%s3 + $0x90] sm:$0xf]
    %v2127 = vld [vmem:[%s3 + $0x94] sm:$0xf]
    %v2128 = vld [vmem:[%s3 + $0x98] sm:$0xf]
    %v2129 = vld [vmem:[%s3 + $0x9c] sm:$0xf]
    %v2130 = vld [vmem:[%s3 + $0xa0] sm:$0xf]
    %v2131 = vld [vmem:[%s3 + $0xa4] sm:$0xf]
    %v2132 = vld [vmem:[%s3 + $0xa8] sm:$0xf]
    %v2133 = vld [vmem:[%s3 + $0xac] sm:$0xf]
    %v2134 = vld [vmem:[%s3 + $0xb0] sm:$0xf]
    %v2135 = vld [vmem:[%s3 + $0xb4] sm:$0xf]
    %v2136 = vld [vmem:[%s3 + $0xb8] sm:$0xf]
    %v2137 = vld [vmem:[%s3 + $0xbc] sm:$0xf]
    %v2138 = vld [vmem:[%s3 + $0xc0] sm:$0xf]
    %v2139 = vld [vmem:[%s3 + $0xc4] sm:$0xf]
    %v2140 = vld [vmem:[%s3 + $0xc8] sm:$0xf]
    %v2141 = vld [vmem:[%s3 + $0xcc] sm:$0xf]
    %v2142 = vld [vmem:[%s3 + $0xd0] sm:$0xf]
    %v2143 = vld [vmem:[%s3 + $0xd4] sm:$0xf]
    %v2144 = vld [vmem:[%s3 + $0xd8] sm:$0xf]
    %v2145 = vld [vmem:[%s3 + $0xdc] sm:$0xf]
    %v2146 = vld [vmem:[%s3 + $0xe0] sm:$0xf]
    %v2147 = vld [vmem:[%s3 + $0xe4] sm:$0xf]
    %v2148 = vld [vmem:[%s3 + $0xe8] sm:$0xf]
    %v2149 = vld [vmem:[%s3 + $0xec] sm:$0xf]
    %v2150 = vld [vmem:[%s3 + $0xf0] sm:$0xf]
    %v2151 = vld [vmem:[%s3 + $0xf4] sm:$0xf]
    %v2152 = vld [vmem:[%s3 + $0xf8] sm:$0xf]
    %v2153 = vld [vmem:[%s3 + $0xfc] sm:$0xf]
    %v2154 = vld [vmem:[%s4] sm:$0x1]
    %v2156 = vperm.slane %v2154, 0
    %v2222 = vunpack.c.l.b16 %v2090
    %v2223 = vunpack.c.l.b16 %v2091
    %v2224 = vunpack.c.l.b16 %v2092
    %v2225 = vunpack.c.l.b16 %v2093
    %v2226 = vunpack.c.l.b16 %v2094
    %v2227 = vunpack.c.l.b16 %v2095
    %v2228 = vunpack.c.l.b16 %v2096
    %v2229 = vunpack.c.l.b16 %v2097
    %v2230 = vunpack.c.l.b16 %v2098
    %v2231 = vunpack.c.l.b16 %v2099
    %v2232 = vunpack.c.l.b16 %v2100
    %v2233 = vunpack.c.l.b16 %v2101
    %v2234 = vunpack.c.l.b16 %v2102
    %v2235 = vunpack.c.l.b16 %v2103
    %v2236 = vunpack.c.l.b16 %v2104
    %v2237 = vunpack.c.l.b16 %v2105
    %v2238 = vunpack.c.l.b16 %v2106
    %v2239 = vunpack.c.l.b16 %v2107
    %v2240 = vunpack.c.l.b16 %v2108
    %v2241 = vunpack.c.l.b16 %v2109
    %v2242 = vunpack.c.l.b16 %v2110
    %v2243 = vunpack.c.l.b16 %v2111
    %v2244 = vunpack.c.l.b16 %v2112
    %v2245 = vunpack.c.l.b16 %v2113
    %v2246 = vunpack.c.l.b16 %v2114
    %v2247 = vunpack.c.l.b16 %v2115
    %v2248 = vunpack.c.l.b16 %v2116
    %v2249 = vunpack.c.l.b16 %v2117
    %v2250 = vunpack.c.l.b16 %v2118
    %v2251 = vunpack.c.l.b16 %v2119
    %v2252 = vunpack.c.l.b16 %v2120
    %v2253 = vunpack.c.l.b16 %v2121
    %v2254 = vunpack.c.l.b16 %v2122
    %v2255 = vunpack.c.l.b16 %v2123
    %v2256 = vunpack.c.l.b16 %v2124
    %v2257 = vunpack.c.l.b16 %v2125
    %v2258 = vunpack.c.l.b16 %v2126
    %v2259 = vunpack.c.l.b16 %v2127
    %v2260 = vunpack.c.l.b16 %v2128
    %v2261 = vunpack.c.l.b16 %v2129
    %v2262 = vunpack.c.l.b16 %v2130
    %v2263 = vunpack.c.l.b16 %v2131
    %v2264 = vunpack.c.l.b16 %v2132
    %v2265 = vunpack.c.l.b16 %v2133
    %v2266 = vunpack.c.l.b16 %v2134
    %v2267 = vunpack.c.l.b16 %v2135
    %v2268 = vunpack.c.l.b16 %v2136
    %v2269 = vunpack.c.l.b16 %v2137
    %v2270 = vunpack.c.l.b16 %v2138
    %v2271 = vunpack.c.l.b16 %v2139
    %v2272 = vunpack.c.l.b16 %v2140
    %v2273 = vunpack.c.l.b16 %v2141
    %v2274 = vunpack.c.l.b16 %v2142
    %v2275 = vunpack.c.l.b16 %v2143
    %v2276 = vunpack.c.l.b16 %v2144
    %v2277 = vunpack.c.l.b16 %v2145
    %v2278 = vunpack.c.l.b16 %v2146
    %v2279 = vunpack.c.l.b16 %v2147
    %v2280 = vunpack.c.l.b16 %v2148
    %v2281 = vunpack.c.l.b16 %v2149
    %v2282 = vunpack.c.l.b16 %v2150
    %v2283 = vunpack.c.l.b16 %v2151
    %v2284 = vunpack.c.l.b16 %v2152
    %v2285 = vunpack.c.l.b16 %v2153
    %v2286 = vpack.c.b16 %v2223, %v2222
    %v2287 = vpack.c.b16 %v2225, %v2224
    %v2288 = vpack.c.b16 %v2227, %v2226
    %v2289 = vpack.c.b16 %v2229, %v2228
    %v2290 = vpack.c.b16 %v2231, %v2230
    %v2291 = vpack.c.b16 %v2233, %v2232
    %v2292 = vpack.c.b16 %v2235, %v2234
    %v2293 = vpack.c.b16 %v2237, %v2236
    %v2294 = vpack.c.b16 %v2239, %v2238
    %v2295 = vpack.c.b16 %v2241, %v2240
    %v2296 = vpack.c.b16 %v2243, %v2242
    %v2297 = vpack.c.b16 %v2245, %v2244
    %v2298 = vpack.c.b16 %v2247, %v2246
    %v2299 = vpack.c.b16 %v2249, %v2248
    %v2300 = vpack.c.b16 %v2251, %v2250
    %v2301 = vpack.c.b16 %v2253, %v2252
    %v2302 = vpack.c.b16 %v2255, %v2254
    %v2303 = vpack.c.b16 %v2257, %v2256
    %v2304 = vpack.c.b16 %v2259, %v2258
    %v2305 = vpack.c.b16 %v2261, %v2260
    %v2306 = vpack.c.b16 %v2263, %v2262
    %v2307 = vpack.c.b16 %v2265, %v2264
    %v2308 = vpack.c.b16 %v2267, %v2266
    %v2309 = vpack.c.b16 %v2269, %v2268
    %v2310 = vpack.c.b16 %v2271, %v2270
    %v2311 = vpack.c.b16 %v2273, %v2272
    %v2312 = vpack.c.b16 %v2275, %v2274
    %v2313 = vpack.c.b16 %v2277, %v2276
    %v2314 = vpack.c.b16 %v2279, %v2278
    %v2315 = vpack.c.b16 %v2281, %v2280
    %v2316 = vpack.c.b16 %v2283, %v2282
    %v2317 = vpack.c.b16 %v2285, %v2284
    %2350 = vmatpush.bf16.msra.mxu0 %v2293
    %2351 = vmatpush.bf16.msra.mxu0 %v2292
    %2352 = vmatpush.bf16.msra.mxu0 %v2291
    %2353 = vmatpush.bf16.msra.mxu0 %v2290
    %2354 = vmatpush.bf16.msra.mxu0 %v2289
    %2355 = vmatpush.bf16.msra.mxu0 %v2288
    %2356 = vmatpush.bf16.msra.mxu0 %v2287
    %2357 = vmatpush.bf16.msra.mxu0 %v2286
    %2358 = vmatmul.bf16.gmra.mxu0 %v2086
    %v2359 = vpop.f32.mrf.mxu0
    %v2360 = vadd.f32 %v2156, %v2359
    %v2361 = vpop.f32.mrf.mxu0
    %v2362 = vadd.f32 %v2156, %v2361
    %2363 = vdwg.mxu0
    %2364 = vmatpush.bf16.msra.mxu0 %v2301
    %2365 = vmatpush.bf16.msra.mxu0 %v2300
    %2366 = vmatpush.bf16.msra.mxu0 %v2299
    %2367 = vmatpush.bf16.msra.mxu0 %v2298
    %2368 = vmatpush.bf16.msra.mxu0 %v2297
    %2369 = vmatpush.bf16.msra.mxu0 %v2296
    %2370 = vmatpush.bf16.msra.mxu0 %v2295
    %2371 = vmatpush.bf16.msra.mxu0 %v2294
    %2372 = vmatmul.bf16.gmra.mxu0 %v2087
    %v2373 = vpop.f32.mrf.mxu0
    %v2374 = vadd.f32 %v2360, %v2373
    %v2375 = vpop.f32.mrf.mxu0
    %v2376 = vadd.f32 %v2362, %v2375
    %2377 = vdwg.mxu0
    %2378 = vmatpush.bf16.msra.mxu0 %v2309
    %2379 = vmatpush.bf16.msra.mxu0 %v2308
    %2380 = vmatpush.bf16.msra.mxu0 %v2307
    %2381 = vmatpush.bf16.msra.mxu0 %v2306
    %2382 = vmatpush.bf16.msra.mxu0 %v2305
    %2383 = vmatpush.bf16.msra.mxu0 %v2304
    %2384 = vmatpush.bf16.msra.mxu0 %v2303
    %2385 = vmatpush.bf16.msra.mxu0 %v2302
    %2386 = vmatmul.bf16.gmra.mxu0 %v2088
    %v2387 = vpop.f32.mrf.mxu0
    %v2388 = vadd.f32 %v2374, %v2387
    %v2389 = vpop.f32.mrf.mxu0
    %v2390 = vadd.f32 %v2376, %v2389
    %2391 = vdwg.mxu0
    %2392 = vmatpush.bf16.msra.mxu0 %v2317
    %2393 = vmatpush.bf16.msra.mxu0 %v2316
    %2394 = vmatpush.bf16.msra.mxu0 %v2315
    %2395 = vmatpush.bf16.msra.mxu0 %v2314
    %2396 = vmatpush.bf16.msra.mxu0 %v2313
    %2397 = vmatpush.bf16.msra.mxu0 %v2312
    %2398 = vmatpush.bf16.msra.mxu0 %v2311
    %2399 = vmatpush.bf16.msra.mxu0 %v2310
    %2400 = vmatmul.bf16.gmra.mxu0 %v2089
    %v2401 = vpop.f32.mrf.mxu0
    %v2402 = vadd.f32 %v2388, %v2401
    %v2403 = vpop.f32.mrf.mxu0
    %v2404 = vadd.f32 %v2390, %v2403
    %2405 = vdwg.mxu0
    %2406 = vst [vmem:[%s5] sm:$0xff] %v2402
    %2407 = vst [vmem:[%s5 + $0x8] sm:$0xff] %v2404
    // Predicated region
    $region26: #{xception_forward.1} parent=1 // pred_check
      _
    $region27: #{xception_forward.1} parent=1 // pred_check_branch
      %2409 = sbr.rel (0) target = $region29
    $region28: #{xception_forward.1} parent=1 // pred_region
      _
    $region29: #{xception_forward.1} parent=1 // pred_fallthru
      _
    // Predicated region
    $region30: #{xception_forward.1} parent=1 // pred_check
      _
    $region31: #{xception_forward.1} parent=1 // pred_check_branch
      %2411 = sbr.rel (0) target = $region33
    $region32: #{xception_forward.1} parent=1 // pred_region
      _
    $region33: #{xception_forward.1} parent=1 // pred_fallthru
      _
    %2412 = vsyncpa [#allocation3], 1

</llo_original>
